<compile_context>
chip_gen: v5e
topology: v5e:2x2
jax: 0.10.0
libtpu: 0.0.40
codegen_flags: <defaults>
</compile_context>

<pallas_src>
import jax
import jax.numpy as jnp
from jax.experimental import pallas as pl
from jax.experimental.pallas import tpu as pltpu


# ----------------------------------------------------------------------------
# Pallas kernel 1: fused backbone  (im2col'd 3x3 conv + ReLU -> 1x1 conv + ReLU)
# ----------------------------------------------------------------------------
def _backbone_kernel(a_ref, w1_ref, b1_ref, w2_ref, b2_ref, o_ref):
    # (tm, K1)bf16 @ (K1, N1)bf16 -> f32 acc ; intermediate stays in vregs/VMEM
    h = jnp.dot(a_ref[...], w1_ref[...], preferred_element_type=jnp.float32)
    h = jnp.maximum(h + b1_ref[...], 0.0)
    y = jnp.dot(h.astype(jnp.bfloat16), w2_ref[...],
                preferred_element_type=jnp.float32)
    y = jnp.maximum(y + b2_ref[...], 0.0)
    o_ref[...] = y.astype(o_ref.dtype)


def _pick_row_tile(m, max_rows=1024):
    # Single grid step if everything fits comfortably in VMEM, else tile rows.
    if m <= max_rows:
        return m
    for t in (1024, 512, 256, 128, 64, 32, 16, 8):
        if m % t == 0:
            return t
    return m


def backbone_fused(a, w1, b1, w2, b2):
    """relu(relu(A @ W1 + b1) @ W2 + b2), M-tiled grid, bf16 in / bf16 out."""
    M, K1 = a.shape
    N1 = w1.shape[1]
    N2 = w2.shape[1]
    tm = _pick_row_tile(M)
    return pl.pallas_call(
        _backbone_kernel,
        out_shape=jax.ShapeDtypeStruct((M, N2), jnp.bfloat16),
        grid=(M // tm,),
        in_specs=[
            pl.BlockSpec((tm, K1), lambda i: (i, 0)),
            pl.BlockSpec((K1, N1), lambda i: (0, 0)),
            pl.BlockSpec((1, N1), lambda i: (0, 0)),
            pl.BlockSpec((N1, N2), lambda i: (0, 0)),
            pl.BlockSpec((1, N2), lambda i: (0, 0)),
        ],
        out_specs=pl.BlockSpec((tm, N2), lambda i: (i, 0)),
        compiler_params=pltpu.CompilerParams(
            dimension_semantics=("parallel",)),
    )(a, w1, b1, w2, b2)


# ----------------------------------------------------------------------------
# Pallas kernel 2: fused pixel-wise correlation + corner/cls heads.
#   zx  = zf (Nz,C) @ xf^T (C,Nx)          (stays in VMEM, never hits HBM)
#   h1  = relu(W1 (96,Nz) @ zx + b1)        (tl/br/cls conv1 fused along rows)
#   out = W2 (3,96) @ h1 + b2               (tl_conv2 / br_conv2 / cls_fc fused)
# ----------------------------------------------------------------------------
def _corr_heads_kernel(zf_ref, xf_ref, w1_ref, b1_ref, w2_ref, b2_ref, o_ref):
    zx = jnp.dot(zf_ref[0], xf_ref[0], preferred_element_type=jnp.float32)
    h1 = jnp.dot(w1_ref[...], zx.astype(jnp.bfloat16),
                 preferred_element_type=jnp.float32)
    h1 = jnp.maximum(h1 + b1_ref[...], 0.0)
    out = jnp.dot(w2_ref[...], h1.astype(jnp.bfloat16),
                  preferred_element_type=jnp.float32) + b2_ref[...]
    o_ref[0] = out.astype(o_ref.dtype)


def corr_heads_fused(zf, xf_t, w1, b1, w2, b2):
    B, Nz, C = zf.shape
    Nx = xf_t.shape[2]
    Ch = w1.shape[0]
    Nh = w2.shape[0]
    return pl.pallas_call(
        _corr_heads_kernel,
        out_shape=jax.ShapeDtypeStruct((B, Nh, Nx), jnp.float32),
        grid=(B,),
        in_specs=[
            pl.BlockSpec((1, Nz, C), lambda b: (b, 0, 0)),
            pl.BlockSpec((1, C, Nx), lambda b: (b, 0, 0)),
            pl.BlockSpec((Ch, Nz), lambda b: (0, 0)),
            pl.BlockSpec((Ch, 1), lambda b: (0, 0)),
            pl.BlockSpec((Nh, Ch), lambda b: (0, 0)),
            pl.BlockSpec((Nh, 1), lambda b: (0, 0)),
        ],
        out_specs=pl.BlockSpec((1, Nh, Nx), lambda b: (b, 0, 0)),
        compiler_params=pltpu.CompilerParams(
            dimension_semantics=("parallel",)),
    )(zf, xf_t, w1, b1, w2, b2)


# ----------------------------------------------------------------------------
# JAX glue (im2col, layout plumbing) — channels-last internally
# ----------------------------------------------------------------------------
def im2col_3x3_same_nhwc(x_nhwc):
    # (B, H, W, C) -> (B*H*W, C*9); column index k = c*9 + (di*3 + dj)
    B, H, W, C = x_nhwc.shape
    xp = jnp.pad(x_nhwc, ((0, 0), (1, 1), (1, 1), (0, 0)))
    cols = [xp[:, di:di + H, dj:dj + W, :] for di in range(3) for dj in range(3)]
    patches = jnp.stack(cols, axis=-1)           # (B, H, W, C, 9)
    return patches.reshape(B * H * W, C * 9)


# ----------------------------------------------------------------------------
# Synthetic QFNet parameters + forward
# ----------------------------------------------------------------------------
def init_params(key):
    ks = jax.random.split(key, 16)

    def w(k, shape, scale):
        return jax.random.normal(k, shape, jnp.float32) * scale

    return {
        # backbone (ChostNet_Wrapper stand-in, shared between z and x)
        "bb_conv1_w": w(ks[0], (8, 4, 3, 3), 0.2),
        "bb_conv1_b": w(ks[1], (8,), 0.1),
        "bb_conv2_w": w(ks[2], (16, 8, 1, 1), 0.2),
        "bb_conv2_b": w(ks[3], (16,), 0.1),
        # corner head (get_score_map: tl / br branches) on 64-ch fused map
        "tl_conv1_w": w(ks[4], (32, 64, 1, 1), 0.1),
        "tl_conv1_b": w(ks[5], (32,), 0.1),
        "tl_conv2_w": w(ks[6], (1, 32, 1, 1), 0.1),
        "tl_conv2_b": w(ks[7], (1,), 0.1),
        "br_conv1_w": w(ks[8], (32, 64, 1, 1), 0.1),
        "br_conv1_b": w(ks[9], (32,), 0.1),
        "br_conv2_w": w(ks[10], (1, 32, 1, 1), 0.1),
        "br_conv2_b": w(ks[11], (1,), 0.1),
        # cls head
        "cls_conv_w": w(ks[12], (32, 64, 1, 1), 0.1),
        "cls_conv_b": w(ks[13], (32,), 0.1),
        "cls_fc_w": w(ks[14], (32, 1), 0.1),
        "cls_fc_b": w(ks[15], (1, 1), 0.1),
    }


def qfnet_forward(params, z, x):
    """QFNet.forward(z, x) -> (tl_map, br_map, cls)."""
    B, Cin, Hz, Wz = z.shape
    _, _, Hx, Wx = x.shape
    Nz, Nx = Hz * Wz, Hx * Wx

    # NCHW -> NHWC once at the boundary; bf16 activations end-to-end.
    z_nhwc = z.transpose(0, 2, 3, 1).astype(jnp.bfloat16)
    x_nhwc = x.transpose(0, 2, 3, 1).astype(jnp.bfloat16)

    # ---- fused backbone (shared weights): one Pallas call for z and x ----
    a = jnp.concatenate(
        [im2col_3x3_same_nhwc(z_nhwc), im2col_3x3_same_nhwc(x_nhwc)], axis=0)
    c1o = params["bb_conv1_w"].shape[0]
    c2o = params["bb_conv2_w"].shape[0]
    bw1 = params["bb_conv1_w"].reshape(c1o, Cin * 9).T.astype(jnp.bfloat16)
    bb1 = params["bb_conv1_b"].reshape(1, c1o).astype(jnp.float32)
    bw2 = params["bb_conv2_w"].reshape(c2o, c1o).T.astype(jnp.bfloat16)
    bb2 = params["bb_conv2_b"].reshape(1, c2o).astype(jnp.float32)
    feats = backbone_fused(a, bw1, bb1, bw2, bb2)       # (B*Nz + B*Nx, 16) bf16

    C = c2o
    zf = feats[:B * Nz].reshape(B, Nz, C)               # (B, Nz, C) — LHS ready
    xf = feats[B * Nz:].reshape(B, Nx, C)
    xf_t = xf.transpose(0, 2, 1)                        # (B, C, Nx) — RHS ready

    # ---- fused correlation + heads: pack head weights once ----
    hw1 = jnp.concatenate(
        [params["tl_conv1_w"].reshape(32, Nz),
         params["br_conv1_w"].reshape(32, Nz),
         params["cls_conv_w"].reshape(32, Nz)], axis=0).astype(jnp.bfloat16)
    hb1 = jnp.concatenate(
        [params["tl_conv1_b"], params["br_conv1_b"], params["cls_conv_b"]]
    ).reshape(96, 1).astype(jnp.float32)
    hw2 = jnp.zeros((3, 96), jnp.float32)
    hw2 = hw2.at[0, 0:32].set(params["tl_conv2_w"].reshape(32))
    hw2 = hw2.at[1, 32:64].set(params["br_conv2_w"].reshape(32))
    hw2 = hw2.at[2, 64:96].set(params["cls_fc_w"].reshape(32))
    hw2 = hw2.astype(jnp.bfloat16)
    hb2 = jnp.stack(
        [params["tl_conv2_b"][0], params["br_conv2_b"][0],
         params["cls_fc_b"][0, 0]]).reshape(3, 1).astype(jnp.float32)

    out = corr_heads_fused(zf, xf_t, hw1, hb1, hw2, hb2)   # (B, 3, Nx) f32

    tl_map = out[:, 0, :].reshape(B, 1, Hx, Wx)
    br_map = out[:, 1, :].reshape(B, 1, Hx, Wx)
    # cls: linear & spatial mean commute (bias is constant), finish in JAX.
    cls = jnp.mean(out[:, 2, :], axis=-1, keepdims=True)   # (B, 1)
    return tl_map, br_map, cls


# ----------------------------------------------------------------------------
# Pure-JAX f32 reference (no Pallas) for a correctness sanity check.
# ----------------------------------------------------------------------------
def _ref_conv(x, w, b, relu):
    y = jax.lax.conv_general_dilated(
        x, w, (1, 1), "SAME", dimension_numbers=("NCHW", "OIHW", "NCHW"),
        precision=jax.lax.Precision.HIGHEST)
    y = y + b.reshape(1, -1, 1, 1)
    return jnp.maximum(y, 0.0) if relu else y


def qfnet_forward_ref(params, z, x):
    def backbone(t):
        t = _ref_conv(t, params["bb_conv1_w"], params["bb_conv1_b"], True)
        t = _ref_conv(t, params["bb_conv2_w"], params["bb_conv2_b"], True)
        return t

    zf = backbone(z)
    xf = backbone(x)
    B, C, Hz, Wz = zf.shape
    _, _, Hx, Wx = xf.shape
    zx = jnp.einsum("bcn,bcm->bnm", zf.reshape(B, C, -1), xf.reshape(B, C, -1),
                    precision=jax.lax.Precision.HIGHEST)
    zx = zx.reshape(B, Hz * Wz, Hx, Wx)
    tl = _ref_conv(zx, params["tl_conv1_w"], params["tl_conv1_b"], True)
    tl_map = _ref_conv(tl, params["tl_conv2_w"], params["tl_conv2_b"], False)
    br = _ref_conv(zx, params["br_conv1_w"], params["br_conv1_b"], True)
    br_map = _ref_conv(br, params["br_conv2_w"], params["br_conv2_b"], False)
    h = _ref_conv(zx, params["cls_conv_w"], params["cls_conv_b"], True)
    pooled = jnp.mean(h, axis=(2, 3))
    cls = pooled @ params["cls_fc_w"] + params["cls_fc_b"]
    return tl_map, br_map, cls


if __name__ == "__main__":
    key = jax.random.PRNGKey(0)
    kz, kx, kp = jax.random.split(key, 3)

    # template z (small crop) and search region x, PyTorch NCHW convention
    z = jax.random.normal(kz, (2, 4, 8, 8), jnp.float32)
    x = jax.random.normal(kx, (2, 4, 16, 16), jnp.float32)
    params = init_params(kp)

    tl_map, br_map, cls = jax.block_until_ready(
        jax.jit(qfnet_forward)(params, z, x))

    # sanity check vs. pure-JAX f32 reference (bf16 MXU operands with f32
    # accumulation in the kernels -> slightly looser tolerance)
    tl_r, br_r, cls_r = jax.jit(qfnet_forward_ref)(params, z, x)
    assert tl_map.shape == (2, 1, 16, 16) and br_map.shape == (2, 1, 16, 16)
    assert cls.shape == (2, 1)
    assert jnp.allclose(tl_map, tl_r, rtol=5e-2, atol=5e-2)
    assert jnp.allclose(br_map, br_r, rtol=5e-2, atol=5e-2)
    assert jnp.allclose(cls, cls_r, rtol=5e-2, atol=5e-2)

    print("KERNEL_OK")
</pallas_src>

<mosaic_0001>
module attributes {stable_mosaic.version = 11 : i64} {
  func.func @_backbone_kernel(%arg0: i32, %arg1: memref<640x36xbf16, #tpu.memory_space<vmem>>, %arg2: memref<36x8xbf16, #tpu.memory_space<vmem>>, %arg3: memref<1x8xf32, #tpu.memory_space<vmem>>, %arg4: memref<8x16xbf16, #tpu.memory_space<vmem>>, %arg5: memref<1x16xf32, #tpu.memory_space<vmem>>, %arg6: memref<640x16xbf16, #tpu.memory_space<vmem>>) attributes {dimension_semantics = [#tpu.dimension_semantics<parallel>], iteration_bounds = array<i64: 1>, scalar_prefetch = 0 : i64, scratch_operands = 0 : i64, tpu.core_type = #tpu.core_type<tc>, window_params = [{transform_indices = @transform_0, window_bounds = array<i64: 640, 36>}, {pipeline_mode = #tpu.pipeline_mode<synchronous>, transform_indices = @transform_1, window_bounds = array<i64: 36, 8>}, {pipeline_mode = #tpu.pipeline_mode<synchronous>, transform_indices = @transform_2, window_bounds = array<i64: 1, 8>}, {pipeline_mode = #tpu.pipeline_mode<synchronous>, transform_indices = @transform_3, window_bounds = array<i64: 8, 16>}, {pipeline_mode = #tpu.pipeline_mode<synchronous>, transform_indices = @transform_4, window_bounds = array<i64: 1, 16>}, {transform_indices = @transform_5, window_bounds = array<i64: 640, 16>}]} {
    %c0 = arith.constant 0 : index
    %c0_0 = arith.constant 0 : index
    %0 = vector.load %arg1[%c0, %c0_0] : memref<640x36xbf16, #tpu.memory_space<vmem>>, vector<640x36xbf16>
    %c0_1 = arith.constant 0 : index
    %c0_2 = arith.constant 0 : index
    %1 = vector.load %arg2[%c0_1, %c0_2] : memref<36x8xbf16, #tpu.memory_space<vmem>>, vector<36x8xbf16>
    %cst = arith.constant dense<0.000000e+00> : vector<640x8xf32>
    %2 = tpu.matmul %0, %1, %cst {dimension_numbers = #tpu.dot_dimension_numbers<[1], [0], [0], [1], [0, 0, 1, 1], [], []>} : vector<640x36xbf16>, vector<36x8xbf16>, vector<640x8xf32> -> vector<640x8xf32>
    %c0_3 = arith.constant 0 : index
    %c0_4 = arith.constant 0 : index
    %3 = vector.load %arg3[%c0_3, %c0_4] : memref<1x8xf32, #tpu.memory_space<vmem>>, vector<1x8xf32>
    %4 = vector.broadcast %3 : vector<1x8xf32> to vector<640x8xf32>
    %5 = arith.addf %2, %4 : vector<640x8xf32>
    %cst_5 = arith.constant 0.000000e+00 : f32
    %6 = vector.broadcast %cst_5 : f32 to vector<640x8xf32>
    %7 = arith.maximumf %5, %6 : vector<640x8xf32>
    %8 = arith.truncf %7 : vector<640x8xf32> to vector<640x8xbf16>
    %c0_6 = arith.constant 0 : index
    %c0_7 = arith.constant 0 : index
    %9 = vector.load %arg4[%c0_6, %c0_7] : memref<8x16xbf16, #tpu.memory_space<vmem>>, vector<8x16xbf16>
    %cst_8 = arith.constant dense<0.000000e+00> : vector<640x16xf32>
    %10 = tpu.matmul %8, %9, %cst_8 {dimension_numbers = #tpu.dot_dimension_numbers<[1], [0], [0], [1], [0, 0, 1, 1], [], []>} : vector<640x8xbf16>, vector<8x16xbf16>, vector<640x16xf32> -> vector<640x16xf32>
    %c0_9 = arith.constant 0 : index
    %c0_10 = arith.constant 0 : index
    %11 = vector.load %arg5[%c0_9, %c0_10] : memref<1x16xf32, #tpu.memory_space<vmem>>, vector<1x16xf32>
    %12 = vector.broadcast %11 : vector<1x16xf32> to vector<640x16xf32>
    %13 = arith.addf %10, %12 : vector<640x16xf32>
    %cst_11 = arith.constant 0.000000e+00 : f32
    %14 = vector.broadcast %cst_11 : f32 to vector<640x16xf32>
    %15 = arith.maximumf %13, %14 : vector<640x16xf32>
    %16 = arith.truncf %15 : vector<640x16xf32> to vector<640x16xbf16>
    %c0_12 = arith.constant 0 : index
    %c0_13 = arith.constant 0 : index
    %17 = vector.load %arg6[%c0_12, %c0_13] : memref<640x16xbf16, #tpu.memory_space<vmem>>, vector<640x16xbf16>
    tpu.vector_store %arg6[%c0_12, %c0_13], %16 {strides = array<i32>} : memref<640x16xbf16, #tpu.memory_space<vmem>>, vector<640x16xbf16>,
    return
  }
  func.func @transform_0(%arg0: i32) -> (i32, i32) {
    %c0_i32 = arith.constant 0 : i32
    %c0_i32_0 = arith.constant 0 : i32
    return %arg0, %c0_i32 : i32, i32
  }
  func.func @transform_1(%arg0: i32) -> (i32, i32) {
    %c0_i32 = arith.constant 0 : i32
    %c0_i32_0 = arith.constant 0 : i32
    %c0_i32_1 = arith.constant 0 : i32
    return %c0_i32, %c0_i32_0 : i32, i32
  }
  func.func @transform_2(%arg0: i32) -> (i32, i32) {
    %c0_i32 = arith.constant 0 : i32
    %c0_i32_0 = arith.constant 0 : i32
    %c0_i32_1 = arith.constant 0 : i32
    return %c0_i32, %c0_i32_0 : i32, i32
  }
  func.func @transform_3(%arg0: i32) -> (i32, i32) {
    %c0_i32 = arith.constant 0 : i32
    %c0_i32_0 = arith.constant 0 : i32
    %c0_i32_1 = arith.constant 0 : i32
    return %c0_i32, %c0_i32_0 : i32, i32
  }
  func.func @transform_4(%arg0: i32) -> (i32, i32) {
    %c0_i32 = arith.constant 0 : i32
    %c0_i32_0 = arith.constant 0 : i32
    %c0_i32_1 = arith.constant 0 : i32
    return %c0_i32, %c0_i32_0 : i32, i32
  }
  func.func @transform_5(%arg0: i32) -> (i32, i32) {
    %c0_i32 = arith.constant 0 : i32
    %c0_i32_0 = arith.constant 0 : i32
    return %arg0, %c0_i32 : i32, i32
  }
}

module attributes {stable_mosaic.version = 11 : i64} {
  func.func @_corr_heads_kernel(%arg0: i32, %arg1: memref<1x64x16xbf16, #tpu.memory_space<vmem>>, %arg2: memref<1x16x256xbf16, #tpu.memory_space<vmem>>, %arg3: memref<96x64xbf16, #tpu.memory_space<vmem>>, %arg4: memref<96x1xf32, #tpu.memory_space<vmem>>, %arg5: memref<3x96xbf16, #tpu.memory_space<vmem>>, %arg6: memref<3x1xf32, #tpu.memory_space<vmem>>, %arg7: memref<1x3x256xf32, #tpu.memory_space<vmem>>) attributes {dimension_semantics = [#tpu.dimension_semantics<parallel>], iteration_bounds = array<i64: 2>, scalar_prefetch = 0 : i64, scratch_operands = 0 : i64, tpu.core_type = #tpu.core_type<tc>, window_params = [{transform_indices = @transform_0, window_bounds = array<i64: 1, 64, 16>}, {transform_indices = @transform_1, window_bounds = array<i64: 1, 16, 256>}, {pipeline_mode = #tpu.pipeline_mode<synchronous>, transform_indices = @transform_2, window_bounds = array<i64: 96, 64>}, {pipeline_mode = #tpu.pipeline_mode<synchronous>, transform_indices = @transform_3, window_bounds = array<i64: 96, 1>}, {pipeline_mode = #tpu.pipeline_mode<synchronous>, transform_indices = @transform_4, window_bounds = array<i64: 3, 96>}, {pipeline_mode = #tpu.pipeline_mode<synchronous>, transform_indices = @transform_5, window_bounds = array<i64: 3, 1>}, {transform_indices = @transform_6, window_bounds = array<i64: 1, 3, 256>}]} {
    %c0 = arith.constant 0 : index
    %c0_0 = arith.constant 0 : index
    %c0_1 = arith.constant 0 : index
    %0 = vector.load %arg1[%c0, %c0_0, %c0_1] : memref<1x64x16xbf16, #tpu.memory_space<vmem>>, vector<1x64x16xbf16>
    %1 = vector.shape_cast %0 : vector<1x64x16xbf16> to vector<64x16xbf16>
    %c0_2 = arith.constant 0 : index
    %c0_3 = arith.constant 0 : index
    %c0_4 = arith.constant 0 : index
    %2 = vector.load %arg2[%c0_2, %c0_3, %c0_4] : memref<1x16x256xbf16, #tpu.memory_space<vmem>>, vector<1x16x256xbf16>
    %3 = vector.shape_cast %2 : vector<1x16x256xbf16> to vector<16x256xbf16>
    %cst = arith.constant dense<0.000000e+00> : vector<64x256xf32>
    %4 = tpu.matmul %1, %3, %cst {dimension_numbers = #tpu.dot_dimension_numbers<[1], [0], [0], [1], [0, 0, 1, 1], [], []>} : vector<64x16xbf16>, vector<16x256xbf16>, vector<64x256xf32> -> vector<64x256xf32>
    %c0_5 = arith.constant 0 : index
    %c0_6 = arith.constant 0 : index
    %5 = vector.load %arg3[%c0_5, %c0_6] : memref<96x64xbf16, #tpu.memory_space<vmem>>, vector<96x64xbf16>
    %6 = arith.truncf %4 : vector<64x256xf32> to vector<64x256xbf16>
    %cst_7 = arith.constant dense<0.000000e+00> : vector<96x256xf32>
    %7 = tpu.matmul %5, %6, %cst_7 {dimension_numbers = #tpu.dot_dimension_numbers<[1], [0], [0], [1], [0, 0, 1, 1], [], []>} : vector<96x64xbf16>, vector<64x256xbf16>, vector<96x256xf32> -> vector<96x256xf32>
    %c0_8 = arith.constant 0 : index
    %c0_9 = arith.constant 0 : index
    %8 = vector.load %arg4[%c0_8, %c0_9] : memref<96x1xf32, #tpu.memory_space<vmem>>, vector<96x1xf32>
    %9 = vector.broadcast %8 : vector<96x1xf32> to vector<96x256xf32>
    %10 = arith.addf %7, %9 : vector<96x256xf32>
    %cst_10 = arith.constant 0.000000e+00 : f32
    %11 = vector.broadcast %cst_10 : f32 to vector<96x256xf32>
    %12 = arith.maximumf %10, %11 : vector<96x256xf32>
    %c0_11 = arith.constant 0 : index
    %c0_12 = arith.constant 0 : index
    %13 = vector.load %arg5[%c0_11, %c0_12] : memref<3x96xbf16, #tpu.memory_space<vmem>>, vector<3x96xbf16>
    %14 = arith.truncf %12 : vector<96x256xf32> to vector<96x256xbf16>
    %cst_13 = arith.constant dense<0.000000e+00> : vector<3x256xf32>
    %15 = tpu.matmul %13, %14, %cst_13 {dimension_numbers = #tpu.dot_dimension_numbers<[1], [0], [0], [1], [0, 0, 1, 1], [], []>} : vector<3x96xbf16>, vector<96x256xbf16>, vector<3x256xf32> -> vector<3x256xf32>
    %c0_14 = arith.constant 0 : index
    %c0_15 = arith.constant 0 : index
    %16 = vector.load %arg6[%c0_14, %c0_15] : memref<3x1xf32, #tpu.memory_space<vmem>>, vector<3x1xf32>
    %17 = vector.broadcast %16 : vector<3x1xf32> to vector<3x256xf32>
    %18 = arith.addf %15, %17 : vector<3x256xf32>
    %c0_16 = arith.constant 0 : index
    %c0_17 = arith.constant 0 : index
    %c0_18 = arith.constant 0 : index
    %19 = vector.load %arg7[%c0_16, %c0_17, %c0_18] : memref<1x3x256xf32, #tpu.memory_space<vmem>>, vector<1x3x256xf32>
    %20 = vector.shape_cast %19 : vector<1x3x256xf32> to vector<3x256xf32>
    %21 = vector.shape_cast %18 : vector<3x256xf32> to vector<1x3x256xf32>
    tpu.vector_store %arg7[%c0_16, %c0_17, %c0_18], %21 {strides = array<i32>} : memref<1x3x256xf32, #tpu.memory_space<vmem>>, vector<1x3x256xf32>,
    return
  }
  func.func @transform_0(%arg0: i32) -> (i32, i32, i32) {
    %c0_i32 = arith.constant 0 : i32
    %c0_i32_0 = arith.constant 0 : i32
    %c0_i32_1 = arith.constant 0 : i32
    return %arg0, %c0_i32, %c0_i32_0 : i32, i32, i32
  }
  func.func @transform_1(%arg0: i32) -> (i32, i32, i32) {
    %c0_i32 = arith.constant 0 : i32
    %c0_i32_0 = arith.constant 0 : i32
    %c0_i32_1 = arith.constant 0 : i32
    return %arg0, %c0_i32, %c0_i32_0 : i32, i32, i32
  }
  func.func @transform_2(%arg0: i32) -> (i32, i32) {
    %c0_i32 = arith.constant 0 : i32
    %c0_i32_0 = arith.constant 0 : i32
    %c0_i32_1 = arith.constant 0 : i32
    return %c0_i32, %c0_i32_0 : i32, i32
  }
  func.func @transform_3(%arg0: i32) -> (i32, i32) {
    %c0_i32 = arith.constant 0 : i32
    %c0_i32_0 = arith.constant 0 : i32
    %c0_i32_1 = arith.constant 0 : i32
    return %c0_i32, %c0_i32_0 : i32, i32
  }
  func.func @transform_4(%arg0: i32) -> (i32, i32) {
    %c0_i32 = arith.constant 0 : i32
    %c0_i32_0 = arith.constant 0 : i32
    %c0_i32_1 = arith.constant 0 : i32
    return %c0_i32, %c0_i32_0 : i32, i32
  }
  func.func @transform_5(%arg0: i32) -> (i32, i32) {
    %c0_i32 = arith.constant 0 : i32
    %c0_i32_0 = arith.constant 0 : i32
    %c0_i32_1 = arith.constant 0 : i32
    return %c0_i32, %c0_i32_0 : i32, i32
  }
  func.func @transform_6(%arg0: i32) -> (i32, i32, i32) {
    %c0_i32 = arith.constant 0 : i32
    %c0_i32_0 = arith.constant 0 : i32
    %c0_i32_1 = arith.constant 0 : i32
    return %arg0, %c0_i32, %c0_i32_0 : i32, i32, i32
  }
}

</mosaic_0001>

<llo_original>
// kernel: squeeze.5
$region0: #{squeeze.5}
  %s0 = inlined_call_operand.vmem [shape: f32[2,256], index: 0, kind: input, shape index: {}]
  %s1 = inlined_call_operand.hbm [shape: f32[2,1,16,16], index: 1, kind: output, shape index: {}]
  $region1: #{squeeze.5} parent=0
    #allocation0 [shape = 'u8[16384]{0}', space=vmem, size = 0x4000, scoped, tag = 'operand span for operand 1']
    #allocation1 [shape = 's32[1]{0}', space=sflag, size = 0x4, scoped, tag = 'scoped memory for squeeze.5']
    #allocation2 [shape = 'u8[8192]{0}', space=vmem, size = 0x2000, scoped, tag = 'scoped mem for input reshape']
    %2 = vsyncpa [#allocation1], 0
    %s4 = ssub.s32 4, 1
    %s5 = scalar_lea.vmem %s0, 2
    %v6 = vld [vmem:[%s5] sm:%s4]
    %s7 = scalar_lea.vmem [#allocation2], 8
    %8 = vst [vmem:[%s7] sm:%s4] %v6
    %v9 = vld [vmem:[%s0] sm:%s4]
    %10 = vst [vmem:[#allocation2] sm:%s4] %v9
    %v11 = vld [vmem:[#allocation2] sm:$0x3]
    %vm12 = vcmask 130048
    %13 = vst.msk [vmem:[#allocation0] ss:$16 sm:$0x3] %vm12, %v11
    %s14 = scalar_lea.vmem [#allocation2], 8
    %v15 = vld [vmem:[%s14] sm:$0x3]
    %vm16 = vcmask 130048
    %s17 = scalar_lea.vmem [#allocation0], 8
    %18 = vst.msk [vmem:[%s17] ss:$16 sm:$0x3] %vm16, %v15
    %v19 = vld.sshfl [vmem:[#allocation2] sm:$0xff pattern:$0x99999180]
    %20 = vrot.lane.b32.xlu0 %v19, 112
    %v21 = vpop.permute.xlu0 %20
    %vm22 = vcmask 130048
    %s23 = scalar_lea.vmem [#allocation0], 1
    %24 = vst.msk [vmem:[%s23] ss:$8 sm:$0xf] %vm22, %v21
    %v25 = vld.sshfl [vmem:[#allocation2] sm:$0xff pattern:$0x99999180]
    %26 = vrot.lane.b32.xlu0 %v25, 96
    %v27 = vpop.permute.xlu0 %26
    %vm28 = vcmask 130048
    %s29 = scalar_lea.vmem [#allocation0], 2
    %30 = vst.msk [vmem:[%s29] ss:$8 sm:$0xf] %vm28, %v27
    %v31 = vld.sshfl [vmem:[#allocation2] sm:$0xff pattern:$0x99999180]
    %32 = vrot.lane.b32.xlu0 %v31, 80
    %v33 = vpop.permute.xlu0 %32
    %vm34 = vcmask 130048
    %s35 = scalar_lea.vmem [#allocation0], 3
    %36 = vst.msk [vmem:[%s35] ss:$8 sm:$0xf] %vm34, %v33
    %v37 = vld.sshfl [vmem:[#allocation2] sm:$0xff pattern:$0x99999180]
    %38 = vrot.lane.b32.xlu0 %v37, 64
    %v39 = vpop.permute.xlu0 %38
    %vm40 = vcmask 130048
    %s41 = scalar_lea.vmem [#allocation0], 4
    %42 = vst.msk [vmem:[%s41] ss:$8 sm:$0xf] %vm40, %v39
    %v43 = vld.sshfl [vmem:[#allocation2] sm:$0xff pattern:$0x99999180]
    %44 = vrot.lane.b32.xlu0 %v43, 48
    %v45 = vpop.permute.xlu0 %44
    %vm46 = vcmask 130048
    %s47 = scalar_lea.vmem [#allocation0], 5
    %48 = vst.msk [vmem:[%s47] ss:$8 sm:$0xf] %vm46, %v45
    %v49 = vld.sshfl [vmem:[#allocation2] sm:$0xff pattern:$0x99999180]
    %50 = vrot.lane.b32.xlu0 %v49, 32
    %v51 = vpop.permute.xlu0 %50
    %vm52 = vcmask 130048
    %s53 = scalar_lea.vmem [#allocation0], 6
    %54 = vst.msk [vmem:[%s53] ss:$8 sm:$0xf] %vm52, %v51
    %v55 = vld.sshfl [vmem:[#allocation2] sm:$0xff pattern:$0x99999180]
    %56 = vrot.lane.b32.xlu0 %v55, 16
    %v57 = vpop.permute.xlu0 %56
    %vm58 = vcmask 130048
    %s59 = scalar_lea.vmem [#allocation0], 7
    %60 = vst.msk [vmem:[%s59] ss:$8 sm:$0xf] %vm58, %v57
    %62 = vsyncadd [#allocation1], 0
    %s64 = sshll.u32 [#allocation0], 4
    %s65 = int_to_ptr.vmem [resolvable:$true] %s64
    %s66 = sshll.u32 %s1, 4
    %s67 = int_to_ptr.hbm [resolvable:$true] %s66
    %69 = dma.vmem_to_hbm [thread:$0]  %s65, 512, %s67, [#allocation1]
    %71 = dma.done [#allocation1], 512
    %72 = vsyncpa [#allocation1], 1

// kernel: qfnet_forward.2
$region0: #{qfnet_forward.2}
  #allocation0 [shape = 'u32[]', space=smem, size = 0x4, offset = 0x4, fixed_abs, tag = 'smem constant byte address 0x4 - core index']
  #allocation1 [shape = 'u32[72,128]{1,0:T(1,128)}', space=vmem, size = 0x9000, scoped, tag = 'internal scratch']
  %s0 = inlined_call_operand.vmem [shape: bf16[640,36], index: 0, kind: input, shape index: {}]
  %s1 = inlined_call_operand.vmem [shape: bf16[36,8], index: 1, kind: input, shape index: {}]
  %s2 = inlined_call_operand.vmem [shape: f32[1,8], index: 2, kind: input, shape index: {}]
  %s3 = inlined_call_operand.vmem [shape: bf16[8,16], index: 3, kind: input, shape index: {}]
  %s4 = inlined_call_operand.vmem [shape: f32[1,16], index: 4, kind: input, shape index: {}]
  %s5 = inlined_call_operand.vmem [shape: bf16[640,16], index: 5, kind: output, shape index: {}]
  %s6 = sld [smem:[#allocation0]]
  $region30: #{qfnet_forward.2} parent=0
    _
  %s8 = ssub.s32 1, %s6
  %s9 = scalar_select 0, %s8, %s6
  // Predicated region
  $region2: #{qfnet_forward.2} parent=0 // pred_check
    _
  $region3: #{qfnet_forward.2} parent=0 // pred_check_branch
    %11 = sbr.rel (0) target = $region5
  $region4: #{qfnet_forward.2} parent=0 // pred_region
    _
  $region5: #{qfnet_forward.2} parent=0 // pred_fallthru
    _
  // Predicated region
  $region6: #{qfnet_forward.2} parent=0 // pred_check
    _
  $region7: #{qfnet_forward.2} parent=0 // pred_check_branch
    %13 = sbr.rel (0) target = $region9
  $region8: #{qfnet_forward.2} parent=0 // pred_region
    _
  $region9: #{qfnet_forward.2} parent=0 // pred_fallthru
    _
  // Predicated region
  $region10: #{qfnet_forward.2} parent=0 // pred_check
    _
  $region11: #{qfnet_forward.2} parent=0 // pred_check_branch
    %15 = sbr.rel (0) target = $region13
  $region12: #{qfnet_forward.2} parent=0 // pred_region
    _
  $region13: #{qfnet_forward.2} parent=0 // pred_fallthru
    _
  // Predicated region
  $region14: #{qfnet_forward.2} parent=0 // pred_check
    _
  $region15: #{qfnet_forward.2} parent=0 // pred_check_branch
    %17 = sbr.rel (0) target = $region17
  $region16: #{qfnet_forward.2} parent=0 // pred_region
    _
  $region17: #{qfnet_forward.2} parent=0 // pred_fallthru
    _
  // Predicated region
  $region18: #{qfnet_forward.2} parent=0 // pred_check
    _
  $region19: #{qfnet_forward.2} parent=0 // pred_check_branch
    %19 = sbr.rel (0) target = $region21
  $region20: #{qfnet_forward.2} parent=0 // pred_region
    _
  $region21: #{qfnet_forward.2} parent=0 // pred_fallthru
    _
  %v21 = vld [vmem:[%s0] sm:$0xf]
  %v22 = vld [vmem:[%s0 + $0x4] sm:$0xf]
  %v23 = vld [vmem:[%s0 + $0x8] sm:$0xf]
  %v24 = vld [vmem:[%s0 + $0xc] sm:$0xf]
  %v25 = vld [vmem:[%s0 + $0x10] sm:$0xf]
  %v26 = vld [vmem:[%s0 + $0x14] sm:$0xf]
  %v27 = vld [vmem:[%s0 + $0x18] sm:$0xf]
  %v28 = vld [vmem:[%s0 + $0x1c] sm:$0xf]
  %v29 = vld [vmem:[%s0 + $0x20] sm:$0xf]
  %v30 = vld [vmem:[%s0 + $0x24] sm:$0xf]
  %v31 = vld [vmem:[%s0 + $0x28] sm:$0xf]
  %v32 = vld [vmem:[%s0 + $0x2c] sm:$0xf]
  %v33 = vld [vmem:[%s0 + $0x30] sm:$0xf]
  %v34 = vld [vmem:[%s0 + $0x34] sm:$0xf]
  %v35 = vld [vmem:[%s0 + $0x38] sm:$0xf]
  %v36 = vld [vmem:[%s0 + $0x3c] sm:$0xf]
  %v37 = vld [vmem:[%s0 + $0x40] sm:$0xf]
  %v38 = vld [vmem:[%s0 + $0x44] sm:$0xf]
  %v39 = vld [vmem:[%s0 + $0x48] sm:$0xf]
  %v40 = vld [vmem:[%s0 + $0x4c] sm:$0xf]
  %v41 = vld [vmem:[%s0 + $0x50] sm:$0xf]
  %v42 = vld [vmem:[%s0 + $0x54] sm:$0xf]
  %v43 = vld [vmem:[%s0 + $0x58] sm:$0xf]
  %v44 = vld [vmem:[%s0 + $0x5c] sm:$0xf]
  %v45 = vld [vmem:[%s0 + $0x60] sm:$0xf]
  %v46 = vld [vmem:[%s0 + $0x64] sm:$0xf]
  %v47 = vld [vmem:[%s0 + $0x68] sm:$0xf]
  %v48 = vld [vmem:[%s0 + $0x6c] sm:$0xf]
  %v49 = vld [vmem:[%s0 + $0x70] sm:$0xf]
  %v50 = vld [vmem:[%s0 + $0x74] sm:$0xf]
  %v51 = vld [vmem:[%s0 + $0x78] sm:$0xf]
  %v52 = vld [vmem:[%s0 + $0x7c] sm:$0xf]
  %v53 = vld [vmem:[%s0 + $0x80] sm:$0xf]
  %v54 = vld [vmem:[%s0 + $0x84] sm:$0xf]
  %v55 = vld [vmem:[%s0 + $0x88] sm:$0xf]
  %v56 = vld [vmem:[%s0 + $0x8c] sm:$0xf]
  %v57 = vld [vmem:[%s0 + $0x90] sm:$0xf]
  %v58 = vld [vmem:[%s0 + $0x94] sm:$0xf]
  %v59 = vld [vmem:[%s0 + $0x98] sm:$0xf]
  %v60 = vld [vmem:[%s0 + $0x9c] sm:$0xf]
  %v61 = vld [vmem:[%s0 + $0xa0] sm:$0xf]
  %v62 = vld [vmem:[%s0 + $0xa4] sm:$0xf]
  %v63 = vld [vmem:[%s0 + $0xa8] sm:$0xf]
  %v64 = vld [vmem:[%s0 + $0xac] sm:$0xf]
  %v65 = vld [vmem:[%s0 + $0xb0] sm:$0xf]
  %v66 = vld [vmem:[%s0 + $0xb4] sm:$0xf]
  %v67 = vld [vmem:[%s0 + $0xb8] sm:$0xf]
  %v68 = vld [vmem:[%s0 + $0xbc] sm:$0xf]
  %v69 = vld [vmem:[%s0 + $0xc0] sm:$0xf]
  %v70 = vld [vmem:[%s0 + $0xc4] sm:$0xf]
  %v71 = vld [vmem:[%s0 + $0xc8] sm:$0xf]
  %v72 = vld [vmem:[%s0 + $0xcc] sm:$0xf]
  %v73 = vld [vmem:[%s0 + $0xd0] sm:$0xf]
  %v74 = vld [vmem:[%s0 + $0xd4] sm:$0xf]
  %v75 = vld [vmem:[%s0 + $0xd8] sm:$0xf]
  %v76 = vld [vmem:[%s0 + $0xdc] sm:$0xf]
  %v77 = vld [vmem:[%s0 + $0xe0] sm:$0xf]
  %v78 = vld [vmem:[%s0 + $0xe4] sm:$0xf]
  %v79 = vld [vmem:[%s0 + $0xe8] sm:$0xf]
  %v80 = vld [vmem:[%s0 + $0xec] sm:$0xf]
  %v81 = vld [vmem:[%s0 + $0xf0] sm:$0xf]
  %v82 = vld [vmem:[%s0 + $0xf4] sm:$0xf]
  %v83 = vld [vmem:[%s0 + $0xf8] sm:$0xf]
  %v84 = vld [vmem:[%s0 + $0xfc] sm:$0xf]
  %v85 = vld [vmem:[%s0 + $0x100] sm:$0xf]
  %v86 = vld [vmem:[%s0 + $0x104] sm:$0xf]
  %v87 = vld [vmem:[%s0 + $0x108] sm:$0xf]
  %v88 = vld [vmem:[%s0 + $0x10c] sm:$0xf]
  %v89 = vld [vmem:[%s0 + $0x110] sm:$0xf]
  %v90 = vld [vmem:[%s0 + $0x114] sm:$0xf]
  %v91 = vld [vmem:[%s0 + $0x118] sm:$0xf]
  %v92 = vld [vmem:[%s0 + $0x11c] sm:$0xf]
  %v93 = vld [vmem:[%s0 + $0x120] sm:$0xf]
  %v94 = vld [vmem:[%s0 + $0x124] sm:$0xf]
  %v95 = vld [vmem:[%s0 + $0x128] sm:$0xf]
  %v96 = vld [vmem:[%s0 + $0x12c] sm:$0xf]
  %v97 = vld [vmem:[%s0 + $0x130] sm:$0xf]
  %v98 = vld [vmem:[%s0 + $0x134] sm:$0xf]
  %v99 = vld [vmem:[%s0 + $0x138] sm:$0xf]
  %v100 = vld [vmem:[%s0 + $0x13c] sm:$0xf]
  %v101 = vld [vmem:[%s1] sm:$0xf]
  %v102 = vld [vmem:[%s1 + $0x4] sm:$0xf]
  %v103 = vld [vmem:[%s1 + $0x8] sm:$0xf]
  %v104 = vld [vmem:[%s1 + $0xc] sm:$0xf]
  %v105 = vld [vmem:[%s1 + $0x10] sm:$0x3]
  %v106 = vld [vmem:[%s2] sm:$0x1]
  %v108 = vperm.slane %v106, 0
  %v190 = vunpack.c.l.b16 %v21
  %v191 = vunpack.c.l.b16 %v22
  %v192 = vunpack.c.l.b16 %v23
  %v193 = vunpack.c.l.b16 %v24
  %v194 = vunpack.c.l.b16 %v25
  %v195 = vunpack.c.l.b16 %v26
  %v196 = vunpack.c.l.b16 %v27
  %v197 = vunpack.c.l.b16 %v28
  %v198 = vunpack.c.l.b16 %v29
  %v199 = vunpack.c.l.b16 %v30
  %v200 = vunpack.c.l.b16 %v31
  %v201 = vunpack.c.l.b16 %v32
  %v202 = vunpack.c.l.b16 %v33
  %v203 = vunpack.c.l.b16 %v34
  %v204 = vunpack.c.l.b16 %v35
  %v205 = vunpack.c.l.b16 %v36
  %v206 = vunpack.c.l.b16 %v37
  %v207 = vunpack.c.l.b16 %v38
  %v208 = vunpack.c.l.b16 %v39
  %v209 = vunpack.c.l.b16 %v40
  %v210 = vunpack.c.l.b16 %v41
  %v211 = vunpack.c.l.b16 %v42
  %v212 = vunpack.c.l.b16 %v43
  %v213 = vunpack.c.l.b16 %v44
  %v214 = vunpack.c.l.b16 %v45
  %v215 = vunpack.c.l.b16 %v46
  %v216 = vunpack.c.l.b16 %v47
  %v217 = vunpack.c.l.b16 %v48
  %v218 = vunpack.c.l.b16 %v49
  %v219 = vunpack.c.l.b16 %v50
  %v220 = vunpack.c.l.b16 %v51
  %v221 = vunpack.c.l.b16 %v52
  %v222 = vunpack.c.l.b16 %v53
  %v223 = vunpack.c.l.b16 %v54
  %v224 = vunpack.c.l.b16 %v55
  %v225 = vunpack.c.l.b16 %v56
  %v226 = vunpack.c.l.b16 %v57
  %v227 = vunpack.c.l.b16 %v58
  %v228 = vunpack.c.l.b16 %v59
  %v229 = vunpack.c.l.b16 %v60
  %v230 = vunpack.c.l.b16 %v61
  %v231 = vunpack.c.l.b16 %v62
  %v232 = vunpack.c.l.b16 %v63
  %v233 = vunpack.c.l.b16 %v64
  %v234 = vunpack.c.l.b16 %v65
  %v235 = vunpack.c.l.b16 %v66
  %v236 = vunpack.c.l.b16 %v67
  %v237 = vunpack.c.l.b16 %v68
  %v238 = vunpack.c.l.b16 %v69
  %v239 = vunpack.c.l.b16 %v70
  %v240 = vunpack.c.l.b16 %v71
  %v241 = vunpack.c.l.b16 %v72
  %v242 = vunpack.c.l.b16 %v73
  %v243 = vunpack.c.l.b16 %v74
  %v244 = vunpack.c.l.b16 %v75
  %v245 = vunpack.c.l.b16 %v76
  %v246 = vunpack.c.l.b16 %v77
  %v247 = vunpack.c.l.b16 %v78
  %v248 = vunpack.c.l.b16 %v79
  %v249 = vunpack.c.l.b16 %v80
  %v250 = vunpack.c.l.b16 %v81
  %v251 = vunpack.c.l.b16 %v82
  %v252 = vunpack.c.l.b16 %v83
  %v253 = vunpack.c.l.b16 %v84
  %v254 = vunpack.c.l.b16 %v85
  %v255 = vunpack.c.l.b16 %v86
  %v256 = vunpack.c.l.b16 %v87
  %v257 = vunpack.c.l.b16 %v88
  %v258 = vunpack.c.l.b16 %v89
  %v259 = vunpack.c.l.b16 %v90
  %v260 = vunpack.c.l.b16 %v91
  %v261 = vunpack.c.l.b16 %v92
  %v262 = vunpack.c.l.b16 %v93
  %v263 = vunpack.c.l.b16 %v94
  %v264 = vunpack.c.l.b16 %v95
  %v265 = vunpack.c.l.b16 %v96
  %v266 = vunpack.c.l.b16 %v97
  %v267 = vunpack.c.l.b16 %v98
  %v268 = vunpack.c.l.b16 %v99
  %v269 = vunpack.c.l.b16 %v100
  %v270 = vpack.c.b16 %v191, %v190
  %v271 = vpack.c.b16 %v193, %v192
  %v272 = vpack.c.b16 %v195, %v194
  %v273 = vpack.c.b16 %v197, %v196
  %v274 = vpack.c.b16 %v199, %v198
  %v275 = vpack.c.b16 %v201, %v200
  %v276 = vpack.c.b16 %v203, %v202
  %v277 = vpack.c.b16 %v205, %v204
  %v278 = vpack.c.b16 %v207, %v206
  %v279 = vpack.c.b16 %v209, %v208
  %v280 = vpack.c.b16 %v211, %v210
  %v281 = vpack.c.b16 %v213, %v212
  %v282 = vpack.c.b16 %v215, %v214
  %v283 = vpack.c.b16 %v217, %v216
  %v284 = vpack.c.b16 %v219, %v218
  %v285 = vpack.c.b16 %v221, %v220
  %v286 = vpack.c.b16 %v223, %v222
  %v287 = vpack.c.b16 %v225, %v224
  %v288 = vpack.c.b16 %v227, %v226
  %v289 = vpack.c.b16 %v229, %v228
  %v290 = vpack.c.b16 %v231, %v230
  %v291 = vpack.c.b16 %v233, %v232
  %v292 = vpack.c.b16 %v235, %v234
  %v293 = vpack.c.b16 %v237, %v236
  %v294 = vpack.c.b16 %v239, %v238
  %v295 = vpack.c.b16 %v241, %v240
  %v296 = vpack.c.b16 %v243, %v242
  %v297 = vpack.c.b16 %v245, %v244
  %v298 = vpack.c.b16 %v247, %v246
  %v299 = vpack.c.b16 %v249, %v248
  %v300 = vpack.c.b16 %v251, %v250
  %v301 = vpack.c.b16 %v253, %v252
  %v302 = vpack.c.b16 %v255, %v254
  %v303 = vpack.c.b16 %v257, %v256
  %v304 = vpack.c.b16 %v259, %v258
  %v305 = vpack.c.b16 %v261, %v260
  %v306 = vpack.c.b16 %v263, %v262
  %v307 = vpack.c.b16 %v265, %v264
  %v308 = vpack.c.b16 %v267, %v266
  %v309 = vpack.c.b16 %v269, %v268
  %v315 = vunpack.c.l.b16 %v101
  %v316 = vunpack.c.l.b16 %v102
  %v317 = vunpack.c.l.b16 %v103
  %v318 = vunpack.c.l.b16 %v104
  %v319 = vunpack.c.l.b16 %v105
  %v320 = vpack.c.b16 %v316, %v315
  %v321 = vpack.c.b16 %v318, %v317
  %v322 = vpack.c.b16 %v319, %v319
  %vm325 = vcmask 293888
  %v327 = vsel %vm325, %v270, 0
  %v330 = vsel %vm325, %v271, 0
  %v333 = vsel %vm325, %v272, 0
  %v336 = vsel %vm325, %v273, 0
  %v339 = vsel %vm325, %v274, 0
  %v342 = vsel %vm325, %v275, 0
  %v345 = vsel %vm325, %v276, 0
  %v348 = vsel %vm325, %v277, 0
  %v351 = vsel %vm325, %v278, 0
  %v354 = vsel %vm325, %v279, 0
  %v357 = vsel %vm325, %v280, 0
  %v360 = vsel %vm325, %v281, 0
  %v363 = vsel %vm325, %v282, 0
  %v366 = vsel %vm325, %v283, 0
  %v369 = vsel %vm325, %v284, 0
  %v372 = vsel %vm325, %v285, 0
  %v375 = vsel %vm325, %v286, 0
  %v378 = vsel %vm325, %v287, 0
  %v381 = vsel %vm325, %v288, 0
  %v384 = vsel %vm325, %v289, 0
  %v387 = vsel %vm325, %v290, 0
  %v390 = vsel %vm325, %v291, 0
  %v393 = vsel %vm325, %v292, 0
  %v396 = vsel %vm325, %v293, 0
  %v399 = vsel %vm325, %v294, 0
  %v402 = vsel %vm325, %v295, 0
  %v405 = vsel %vm325, %v296, 0
  %v408 = vsel %vm325, %v297, 0
  %v411 = vsel %vm325, %v298, 0
  %v414 = vsel %vm325, %v299, 0
  %v417 = vsel %vm325, %v300, 0
  %v420 = vsel %vm325, %v301, 0
  %v423 = vsel %vm325, %v302, 0
  %v426 = vsel %vm325, %v303, 0
  %v429 = vsel %vm325, %v304, 0
  %v432 = vsel %vm325, %v305, 0
  %v435 = vsel %vm325, %v306, 0
  %v438 = vsel %vm325, %v307, 0
  %v441 = vsel %vm325, %v308, 0
  %v444 = vsel %vm325, %v309, 0
  %vm446 = vcmask 1041408
  %v448 = vsel %vm446, %v322, 0
  %450 = vmatpush.bf16.msra.mxu0 0
  %451 = vmatpush.bf16.msra.mxu0 0
  %452 = vmatpush.bf16.msra.mxu0 0
  %453 = vmatpush.bf16.msra.mxu0 0
  %454 = vmatpush.bf16.msra.mxu0 0
  %455 = vmatpush.bf16.msra.mxu0 %v448
  %456 = vmatpush.bf16.msra.mxu0 %v321
  %457 = vmatpush.bf16.msra.mxu0 %v320
  %458 = vmatmul.bf16.gmra.mxu0 %v327
  %v459 = vpop.f32.mrf.mxu0
  %v460 = vadd.f32 %v108, %v459
  %v461 = vpop.f32.mrf.mxu0
  %v462 = vadd.f32 %v108, %v461
  %463 = vmatmul.bf16.gmra.mxu0 %v330
  %v464 = vpop.f32.mrf.mxu0
  %v465 = vadd.f32 %v108, %v464
  %v466 = vpop.f32.mrf.mxu0
  %v467 = vadd.f32 %v108, %v466
  %468 = vmatmul.bf16.gmra.mxu0 %v333
  %v469 = vpop.f32.mrf.mxu0
  %v470 = vadd.f32 %v108, %v469
  %v471 = vpop.f32.mrf.mxu0
  %v472 = vadd.f32 %v108, %v471
  %473 = vmatmul.bf16.gmra.mxu0 %v336
  %v474 = vpop.f32.mrf.mxu0
  %v475 = vadd.f32 %v108, %v474
  %v476 = vpop.f32.mrf.mxu0
  %v477 = vadd.f32 %v108, %v476
  %478 = vmatmul.bf16.gmra.mxu0 %v339
  %v479 = vpop.f32.mrf.mxu0
  %v480 = vadd.f32 %v108, %v479
  %v481 = vpop.f32.mrf.mxu0
  %v482 = vadd.f32 %v108, %v481
  %483 = vmatmul.bf16.gmra.mxu0 %v342
  %v484 = vpop.f32.mrf.mxu0
  %v485 = vadd.f32 %v108, %v484
  %v486 = vpop.f32.mrf.mxu0
  %v487 = vadd.f32 %v108, %v486
  %488 = vmatmul.bf16.gmra.mxu0 %v345
  %v489 = vpop.f32.mrf.mxu0
  %v490 = vadd.f32 %v108, %v489
  %v491 = vpop.f32.mrf.mxu0
  %v492 = vadd.f32 %v108, %v491
  %493 = vmatmul.bf16.gmra.mxu0 %v348
  %v494 = vpop.f32.mrf.mxu0
  %v495 = vadd.f32 %v108, %v494
  %v496 = vpop.f32.mrf.mxu0
  %v497 = vadd.f32 %v108, %v496
  %498 = vmatmul.bf16.gmra.mxu0 %v351
  %v499 = vpop.f32.mrf.mxu0
  %v500 = vadd.f32 %v108, %v499
  %v501 = vpop.f32.mrf.mxu0
  %v502 = vadd.f32 %v108, %v501
  %503 = vmatmul.bf16.gmra.mxu0 %v354
  %v504 = vpop.f32.mrf.mxu0
  %v505 = vadd.f32 %v108, %v504
  %v506 = vpop.f32.mrf.mxu0
  %v507 = vadd.f32 %v108, %v506
  %508 = vmatmul.bf16.gmra.mxu0 %v357
  %v509 = vpop.f32.mrf.mxu0
  %v510 = vadd.f32 %v108, %v509
  %v511 = vpop.f32.mrf.mxu0
  %v512 = vadd.f32 %v108, %v511
  %513 = vmatmul.bf16.gmra.mxu0 %v360
  %v514 = vpop.f32.mrf.mxu0
  %v515 = vadd.f32 %v108, %v514
  %v516 = vpop.f32.mrf.mxu0
  %v517 = vadd.f32 %v108, %v516
  %518 = vmatmul.bf16.gmra.mxu0 %v363
  %v519 = vpop.f32.mrf.mxu0
  %v520 = vadd.f32 %v108, %v519
  %v521 = vpop.f32.mrf.mxu0
  %v522 = vadd.f32 %v108, %v521
  %523 = vmatmul.bf16.gmra.mxu0 %v366
  %v524 = vpop.f32.mrf.mxu0
  %v525 = vadd.f32 %v108, %v524
  %v526 = vpop.f32.mrf.mxu0
  %v527 = vadd.f32 %v108, %v526
  %528 = vmatmul.bf16.gmra.mxu0 %v369
  %v529 = vpop.f32.mrf.mxu0
  %v530 = vadd.f32 %v108, %v529
  %v531 = vpop.f32.mrf.mxu0
  %v532 = vadd.f32 %v108, %v531
  %533 = vmatmul.bf16.gmra.mxu0 %v372
  %v534 = vpop.f32.mrf.mxu0
  %v535 = vadd.f32 %v108, %v534
  %v536 = vpop.f32.mrf.mxu0
  %v537 = vadd.f32 %v108, %v536
  %538 = vmatmul.bf16.gmra.mxu0 %v375
  %v539 = vpop.f32.mrf.mxu0
  %v540 = vadd.f32 %v108, %v539
  %v541 = vpop.f32.mrf.mxu0
  %v542 = vadd.f32 %v108, %v541
  %543 = vmatmul.bf16.gmra.mxu0 %v378
  %v544 = vpop.f32.mrf.mxu0
  %v545 = vadd.f32 %v108, %v544
  %v546 = vpop.f32.mrf.mxu0
  %v547 = vadd.f32 %v108, %v546
  %548 = vmatmul.bf16.gmra.mxu0 %v381
  %v549 = vpop.f32.mrf.mxu0
  %v550 = vadd.f32 %v108, %v549
  %v551 = vpop.f32.mrf.mxu0
  %v552 = vadd.f32 %v108, %v551
  %553 = vmatmul.bf16.gmra.mxu0 %v384
  %v554 = vpop.f32.mrf.mxu0
  %v555 = vadd.f32 %v108, %v554
  %v556 = vpop.f32.mrf.mxu0
  %v557 = vadd.f32 %v108, %v556
  %558 = vmatmul.bf16.gmra.mxu0 %v387
  %v559 = vpop.f32.mrf.mxu0
  %v560 = vadd.f32 %v108, %v559
  %v561 = vpop.f32.mrf.mxu0
  %v562 = vadd.f32 %v108, %v561
  %563 = vmatmul.bf16.gmra.mxu0 %v390
  %v564 = vpop.f32.mrf.mxu0
  %v565 = vadd.f32 %v108, %v564
  %v566 = vpop.f32.mrf.mxu0
  %v567 = vadd.f32 %v108, %v566
  %568 = vmatmul.bf16.gmra.mxu0 %v393
  %v569 = vpop.f32.mrf.mxu0
  %v570 = vadd.f32 %v108, %v569
  %v571 = vpop.f32.mrf.mxu0
  %v572 = vadd.f32 %v108, %v571
  %573 = vmatmul.bf16.gmra.mxu0 %v396
  %v574 = vpop.f32.mrf.mxu0
  %v575 = vadd.f32 %v108, %v574
  %v576 = vpop.f32.mrf.mxu0
  %v577 = vadd.f32 %v108, %v576
  %578 = vmatmul.bf16.gmra.mxu0 %v399
  %v579 = vpop.f32.mrf.mxu0
  %v580 = vadd.f32 %v108, %v579
  %v581 = vpop.f32.mrf.mxu0
  %v582 = vadd.f32 %v108, %v581
  %583 = vmatmul.bf16.gmra.mxu0 %v402
  %v584 = vpop.f32.mrf.mxu0
  %v585 = vadd.f32 %v108, %v584
  %v586 = vpop.f32.mrf.mxu0
  %v587 = vadd.f32 %v108, %v586
  %588 = vmatmul.bf16.gmra.mxu0 %v405
  %v589 = vpop.f32.mrf.mxu0
  %v590 = vadd.f32 %v108, %v589
  %v591 = vpop.f32.mrf.mxu0
  %v592 = vadd.f32 %v108, %v591
  %593 = vmatmul.bf16.gmra.mxu0 %v408
  %v594 = vpop.f32.mrf.mxu0
  %v595 = vadd.f32 %v108, %v594
  %v596 = vpop.f32.mrf.mxu0
  %v597 = vadd.f32 %v108, %v596
  %598 = vmatmul.bf16.gmra.mxu0 %v411
  %v599 = vpop.f32.mrf.mxu0
  %v600 = vadd.f32 %v108, %v599
  %v601 = vpop.f32.mrf.mxu0
  %v602 = vadd.f32 %v108, %v601
  %603 = vmatmul.bf16.gmra.mxu0 %v414
  %v604 = vpop.f32.mrf.mxu0
  %v605 = vadd.f32 %v108, %v604
  %v606 = vpop.f32.mrf.mxu0
  %v607 = vadd.f32 %v108, %v606
  %608 = vmatmul.bf16.gmra.mxu0 %v417
  %v609 = vpop.f32.mrf.mxu0
  %v610 = vadd.f32 %v108, %v609
  %v611 = vpop.f32.mrf.mxu0
  %v612 = vadd.f32 %v108, %v611
  %613 = vmatmul.bf16.gmra.mxu0 %v420
  %v614 = vpop.f32.mrf.mxu0
  %v615 = vadd.f32 %v108, %v614
  %v616 = vpop.f32.mrf.mxu0
  %v617 = vadd.f32 %v108, %v616
  %618 = vmatmul.bf16.gmra.mxu0 %v423
  %v619 = vpop.f32.mrf.mxu0
  %v620 = vadd.f32 %v108, %v619
  %v621 = vpop.f32.mrf.mxu0
  %v622 = vadd.f32 %v108, %v621
  %623 = vmatmul.bf16.gmra.mxu0 %v426
  %v624 = vpop.f32.mrf.mxu0
  %v625 = vadd.f32 %v108, %v624
  %v626 = vpop.f32.mrf.mxu0
  %v627 = vadd.f32 %v108, %v626
  %628 = vmatmul.bf16.gmra.mxu0 %v429
  %v629 = vpop.f32.mrf.mxu0
  %v630 = vadd.f32 %v108, %v629
  %v631 = vpop.f32.mrf.mxu0
  %v632 = vadd.f32 %v108, %v631
  %633 = vmatmul.bf16.gmra.mxu0 %v432
  %v634 = vpop.f32.mrf.mxu0
  %v635 = vadd.f32 %v108, %v634
  %v636 = vpop.f32.mrf.mxu0
  %v637 = vadd.f32 %v108, %v636
  %638 = vmatmul.bf16.gmra.mxu0 %v435
  %v639 = vpop.f32.mrf.mxu0
  %v640 = vadd.f32 %v108, %v639
  %v641 = vpop.f32.mrf.mxu0
  %v642 = vadd.f32 %v108, %v641
  %643 = vmatmul.bf16.gmra.mxu0 %v438
  %v644 = vpop.f32.mrf.mxu0
  %v645 = vadd.f32 %v108, %v644
  %v646 = vpop.f32.mrf.mxu0
  %v647 = vadd.f32 %v108, %v646
  %648 = vmatmul.bf16.gmra.mxu0 %v441
  %v649 = vpop.f32.mrf.mxu0
  %v650 = vadd.f32 %v108, %v649
  %v651 = vpop.f32.mrf.mxu0
  %v652 = vadd.f32 %v108, %v651
  %653 = vmatmul.bf16.gmra.mxu0 %v444
  %v654 = vpop.f32.mrf.mxu0
  %v655 = vadd.f32 %v108, %v654
  %v656 = vpop.f32.mrf.mxu0
  %v657 = vadd.f32 %v108, %v656
  %658 = vdwg.mxu0
  %v659 = vmax.f32 %v460, 0.0
  %v660 = vmax.f32 %v462, 0.0
  %v661 = vmax.f32 %v465, 0.0
  %v662 = vmax.f32 %v467, 0.0
  %v663 = vmax.f32 %v470, 0.0
  %v664 = vmax.f32 %v472, 0.0
  %v665 = vmax.f32 %v475, 0.0
  %v666 = vmax.f32 %v477, 0.0
  %v667 = vmax.f32 %v480, 0.0
  %v668 = vmax.f32 %v482, 0.0
  %v669 = vmax.f32 %v485, 0.0
  %v670 = vmax.f32 %v487, 0.0
  %v671 = vmax.f32 %v490, 0.0
  %v672 = vmax.f32 %v492, 0.0
  %v673 = vmax.f32 %v495, 0.0
  %v674 = vmax.f32 %v497, 0.0
  %v675 = vmax.f32 %v500, 0.0
  %v676 = vmax.f32 %v502, 0.0
  %v677 = vmax.f32 %v505, 0.0
  %v678 = vmax.f32 %v507, 0.0
  %v679 = vmax.f32 %v510, 0.0
  %v680 = vmax.f32 %v512, 0.0
  %v681 = vmax.f32 %v515, 0.0
  %v682 = vmax.f32 %v517, 0.0
  %v683 = vmax.f32 %v520, 0.0
  %v684 = vmax.f32 %v522, 0.0
  %v685 = vmax.f32 %v525, 0.0
  %v686 = vmax.f32 %v527, 0.0
  %v687 = vmax.f32 %v530, 0.0
  %v688 = vmax.f32 %v532, 0.0
  %v689 = vmax.f32 %v535, 0.0
  %v690 = vmax.f32 %v537, 0.0
  %v691 = vmax.f32 %v540, 0.0
  %v692 = vmax.f32 %v542, 0.0
  %v693 = vmax.f32 %v545, 0.0
  %v694 = vmax.f32 %v547, 0.0
  %v695 = vmax.f32 %v550, 0.0
  %v696 = vmax.f32 %v552, 0.0
  %v697 = vmax.f32 %v555, 0.0
  %v698 = vmax.f32 %v557, 0.0
  %v699 = vmax.f32 %v560, 0.0
  %v700 = vmax.f32 %v562, 0.0
  %v701 = vmax.f32 %v565, 0.0
  %v702 = vmax.f32 %v567, 0.0
  %v703 = vmax.f32 %v570, 0.0
  %v704 = vmax.f32 %v572, 0.0
  %v705 = vmax.f32 %v575, 0.0
  %v706 = vmax.f32 %v577, 0.0
  %v707 = vmax.f32 %v580, 0.0
  %v708 = vmax.f32 %v582, 0.0
  %v709 = vmax.f32 %v585, 0.0
  %v710 = vmax.f32 %v587, 0.0
  %v711 = vmax.f32 %v590, 0.0
  %v712 = vmax.f32 %v592, 0.0
  %v713 = vmax.f32 %v595, 0.0
  %v714 = vmax.f32 %v597, 0.0
  %v715 = vmax.f32 %v600, 0.0
  %v716 = vmax.f32 %v602, 0.0
  %v717 = vmax.f32 %v605, 0.0
  %v718 = vmax.f32 %v607, 0.0
  %v719 = vmax.f32 %v610, 0.0
  %v720 = vmax.f32 %v612, 0.0
  %v721 = vmax.f32 %v615, 0.0
  %v722 = vmax.f32 %v617, 0.0
  %v723 = vmax.f32 %v620, 0.0
  %v724 = vmax.f32 %v622, 0.0
  %v725 = vmax.f32 %v625, 0.0
  %v726 = vmax.f32 %v627, 0.0
  %v727 = vmax.f32 %v630, 0.0
  %v728 = vmax.f32 %v632, 0.0
  %v729 = vmax.f32 %v635, 0.0
  %v730 = vmax.f32 %v637, 0.0
  %v731 = vmax.f32 %v640, 0.0
  %v732 = vmax.f32 %v642, 0.0
  %v733 = vmax.f32 %v645, 0.0
  %v734 = vmax.f32 %v647, 0.0
  %v735 = vmax.f32 %v650, 0.0
  %v736 = vmax.f32 %v652, 0.0
  %v737 = vmax.f32 %v655, 0.0
  %v738 = vmax.f32 %v657, 0.0
  %v739 = vpack.c.bf16 %v660, %v659
  %v740 = vpack.c.bf16 %v662, %v661
  %v741 = vpack.c.bf16 %v664, %v663
  %v742 = vpack.c.bf16 %v666, %v665
  %v743 = vpack.c.bf16 %v668, %v667
  %v744 = vpack.c.bf16 %v670, %v669
  %v745 = vpack.c.bf16 %v672, %v671
  %v746 = vpack.c.bf16 %v674, %v673
  %v747 = vpack.c.bf16 %v676, %v675
  %v748 = vpack.c.bf16 %v678, %v677
  %v749 = vpack.c.bf16 %v680, %v679
  %v750 = vpack.c.bf16 %v682, %v681
  %v751 = vpack.c.bf16 %v684, %v683
  %v752 = vpack.c.bf16 %v686, %v685
  %v753 = vpack.c.bf16 %v688, %v687
  %v754 = vpack.c.bf16 %v690, %v689
  %v755 = vpack.c.bf16 %v692, %v691
  %v756 = vpack.c.bf16 %v694, %v693
  %v757 = vpack.c.bf16 %v696, %v695
  %v758 = vpack.c.bf16 %v698, %v697
  %v759 = vpack.c.bf16 %v700, %v699
  %v760 = vpack.c.bf16 %v702, %v701
  %v761 = vpack.c.bf16 %v704, %v703
  %v762 = vpack.c.bf16 %v706, %v705
  %v763 = vpack.c.bf16 %v708, %v707
  %v764 = vpack.c.bf16 %v710, %v709
  %v765 = vpack.c.bf16 %v712, %v711
  %v766 = vpack.c.bf16 %v714, %v713
  %v767 = vpack.c.bf16 %v716, %v715
  %v768 = vpack.c.bf16 %v718, %v717
  %v769 = vpack.c.bf16 %v720, %v719
  %v770 = vpack.c.bf16 %v722, %v721
  %v771 = vpack.c.bf16 %v724, %v723
  %v772 = vpack.c.bf16 %v726, %v725
  %v773 = vpack.c.bf16 %v728, %v727
  %v774 = vpack.c.bf16 %v730, %v729
  %v775 = vpack.c.bf16 %v732, %v731
  %v776 = vpack.c.bf16 %v734, %v733
  %v777 = vpack.c.bf16 %v736, %v735
  %v778 = vpack.c.bf16 %v738, %v737
  %v779 = vld [vmem:[%s3] sm:$0xf]
  %v780 = vld [vmem:[%s4] sm:$0x1]
  %v782 = vperm.slane %v780, 0
  %vm784 = vcmask 64512
  %v786 = vsel %vm784, %v739, 0
  %v789 = vsel %vm784, %v740, 0
  %v792 = vsel %vm784, %v741, 0
  %v795 = vsel %vm784, %v742, 0
  %v798 = vsel %vm784, %v743, 0
  %v801 = vsel %vm784, %v744, 0
  %v804 = vsel %vm784, %v745, 0
  %v807 = vsel %vm784, %v746, 0
  %v810 = vsel %vm784, %v747, 0
  %v813 = vsel %vm784, %v748, 0
  %v816 = vsel %vm784, %v749, 0
  %v819 = vsel %vm784, %v750, 0
  %v822 = vsel %vm784, %v751, 0
  %v825 = vsel %vm784, %v752, 0
  %v828 = vsel %vm784, %v753, 0
  %v831 = vsel %vm784, %v754, 0
  %v834 = vsel %vm784, %v755, 0
  %v837 = vsel %vm784, %v756, 0
  %v840 = vsel %vm784, %v757, 0
  %v843 = vsel %vm784, %v758, 0
  %v846 = vsel %vm784, %v759, 0
  %v849 = vsel %vm784, %v760, 0
  %v852 = vsel %vm784, %v761, 0
  %v855 = vsel %vm784, %v762, 0
  %v858 = vsel %vm784, %v763, 0
  %v861 = vsel %vm784, %v764, 0
  %v864 = vsel %vm784, %v765, 0
  %v867 = vsel %vm784, %v766, 0
  %v870 = vsel %vm784, %v767, 0
  %v873 = vsel %vm784, %v768, 0
  %v876 = vsel %vm784, %v769, 0
  %v879 = vsel %vm784, %v770, 0
  %v882 = vsel %vm784, %v771, 0
  %v885 = vsel %vm784, %v772, 0
  %v888 = vsel %vm784, %v773, 0
  %v891 = vsel %vm784, %v774, 0
  %v894 = vsel %vm784, %v775, 0
  %v897 = vsel %vm784, %v776, 0
  %v900 = vsel %vm784, %v777, 0
  %v903 = vsel %vm784, %v778, 0
  %vm905 = vcmask 1043456
  %v907 = vsel %vm905, %v779, 0
  %909 = vmatpush.bf16.msra.mxu0 0
  %910 = vmatpush.bf16.msra.mxu0 0
  %911 = vmatpush.bf16.msra.mxu0 0
  %912 = vmatpush.bf16.msra.mxu0 0
  %913 = vmatpush.bf16.msra.mxu0 0
  %914 = vmatpush.bf16.msra.mxu0 0
  %915 = vmatpush.bf16.msra.mxu0 0
  %916 = vmatpush.bf16.msra.mxu0 %v907
  %917 = vmatmul.bf16.gmra.mxu0 %v786
  %v918 = vpop.f32.mrf.mxu0
  %v919 = vadd.f32 %v782, %v918
  %v920 = vpop.f32.mrf.mxu0
  %v921 = vadd.f32 %v782, %v920
  %922 = vmatmul.bf16.gmra.mxu0 %v789
  %v923 = vpop.f32.mrf.mxu0
  %v924 = vadd.f32 %v782, %v923
  %v925 = vpop.f32.mrf.mxu0
  %v926 = vadd.f32 %v782, %v925
  %927 = vmatmul.bf16.gmra.mxu0 %v792
  %v928 = vpop.f32.mrf.mxu0
  %v929 = vadd.f32 %v782, %v928
  %v930 = vpop.f32.mrf.mxu0
  %v931 = vadd.f32 %v782, %v930
  %932 = vmatmul.bf16.gmra.mxu0 %v795
  %v933 = vpop.f32.mrf.mxu0
  %v934 = vadd.f32 %v782, %v933
  %v935 = vpop.f32.mrf.mxu0
  %v936 = vadd.f32 %v782, %v935
  %937 = vmatmul.bf16.gmra.mxu0 %v798
  %v938 = vpop.f32.mrf.mxu0
  %v939 = vadd.f32 %v782, %v938
  %v940 = vpop.f32.mrf.mxu0
  %v941 = vadd.f32 %v782, %v940
  %942 = vmatmul.bf16.gmra.mxu0 %v801
  %v943 = vpop.f32.mrf.mxu0
  %v944 = vadd.f32 %v782, %v943
  %v945 = vpop.f32.mrf.mxu0
  %v946 = vadd.f32 %v782, %v945
  %947 = vmatmul.bf16.gmra.mxu0 %v804
  %v948 = vpop.f32.mrf.mxu0
  %v949 = vadd.f32 %v782, %v948
  %v950 = vpop.f32.mrf.mxu0
  %v951 = vadd.f32 %v782, %v950
  %952 = vmatmul.bf16.gmra.mxu0 %v807
  %v953 = vpop.f32.mrf.mxu0
  %v954 = vadd.f32 %v782, %v953
  %v955 = vpop.f32.mrf.mxu0
  %v956 = vadd.f32 %v782, %v955
  %957 = vmatmul.bf16.gmra.mxu0 %v810
  %v958 = vpop.f32.mrf.mxu0
  %v959 = vadd.f32 %v782, %v958
  %v960 = vpop.f32.mrf.mxu0
  %v961 = vadd.f32 %v782, %v960
  %962 = vmatmul.bf16.gmra.mxu0 %v813
  %v963 = vpop.f32.mrf.mxu0
  %v964 = vadd.f32 %v782, %v963
  %v965 = vpop.f32.mrf.mxu0
  %v966 = vadd.f32 %v782, %v965
  %967 = vmatmul.bf16.gmra.mxu0 %v816
  %v968 = vpop.f32.mrf.mxu0
  %v969 = vadd.f32 %v782, %v968
  %v970 = vpop.f32.mrf.mxu0
  %v971 = vadd.f32 %v782, %v970
  %972 = vmatmul.bf16.gmra.mxu0 %v819
  %v973 = vpop.f32.mrf.mxu0
  %v974 = vadd.f32 %v782, %v973
  %v975 = vpop.f32.mrf.mxu0
  %v976 = vadd.f32 %v782, %v975
  %977 = vmatmul.bf16.gmra.mxu0 %v822
  %v978 = vpop.f32.mrf.mxu0
  %v979 = vadd.f32 %v782, %v978
  %v980 = vpop.f32.mrf.mxu0
  %v981 = vadd.f32 %v782, %v980
  %982 = vmatmul.bf16.gmra.mxu0 %v825
  %v983 = vpop.f32.mrf.mxu0
  %v984 = vadd.f32 %v782, %v983
  %v985 = vpop.f32.mrf.mxu0
  %v986 = vadd.f32 %v782, %v985
  %987 = vmatmul.bf16.gmra.mxu0 %v828
  %v988 = vpop.f32.mrf.mxu0
  %v989 = vadd.f32 %v782, %v988
  %v990 = vpop.f32.mrf.mxu0
  %v991 = vadd.f32 %v782, %v990
  %992 = vmatmul.bf16.gmra.mxu0 %v831
  %v993 = vpop.f32.mrf.mxu0
  %v994 = vadd.f32 %v782, %v993
  %v995 = vpop.f32.mrf.mxu0
  %v996 = vadd.f32 %v782, %v995
  %997 = vmatmul.bf16.gmra.mxu0 %v834
  %v998 = vpop.f32.mrf.mxu0
  %v999 = vadd.f32 %v782, %v998
  %v1000 = vpop.f32.mrf.mxu0
  %v1001 = vadd.f32 %v782, %v1000
  %1002 = vmatmul.bf16.gmra.mxu0 %v837
  %v1003 = vpop.f32.mrf.mxu0
  %v1004 = vadd.f32 %v782, %v1003
  %v1005 = vpop.f32.mrf.mxu0
  %v1006 = vadd.f32 %v782, %v1005
  %1007 = vmatmul.bf16.gmra.mxu0 %v840
  %v1008 = vpop.f32.mrf.mxu0
  %v1009 = vadd.f32 %v782, %v1008
  %v1010 = vpop.f32.mrf.mxu0
  %v1011 = vadd.f32 %v782, %v1010
  %1012 = vmatmul.bf16.gmra.mxu0 %v843
  %v1013 = vpop.f32.mrf.mxu0
  %v1014 = vadd.f32 %v782, %v1013
  %v1015 = vpop.f32.mrf.mxu0
  %v1016 = vadd.f32 %v782, %v1015
  %1017 = vmatmul.bf16.gmra.mxu0 %v846
  %v1018 = vpop.f32.mrf.mxu0
  %v1019 = vadd.f32 %v782, %v1018
  %v1020 = vpop.f32.mrf.mxu0
  %v1021 = vadd.f32 %v782, %v1020
  %1022 = vmatmul.bf16.gmra.mxu0 %v849
  %v1023 = vpop.f32.mrf.mxu0
  %v1024 = vadd.f32 %v782, %v1023
  %v1025 = vpop.f32.mrf.mxu0
  %v1026 = vadd.f32 %v782, %v1025
  %1027 = vmatmul.bf16.gmra.mxu0 %v852
  %v1028 = vpop.f32.mrf.mxu0
  %v1029 = vadd.f32 %v782, %v1028
  %v1030 = vpop.f32.mrf.mxu0
  %v1031 = vadd.f32 %v782, %v1030
  %1032 = vmatmul.bf16.gmra.mxu0 %v855
  %v1033 = vpop.f32.mrf.mxu0
  %v1034 = vadd.f32 %v782, %v1033
  %v1035 = vpop.f32.mrf.mxu0
  %v1036 = vadd.f32 %v782, %v1035
  %1037 = vmatmul.bf16.gmra.mxu0 %v858
  %v1038 = vpop.f32.mrf.mxu0
  %v1039 = vadd.f32 %v782, %v1038
  %v1040 = vpop.f32.mrf.mxu0
  %v1041 = vadd.f32 %v782, %v1040
  %1042 = vmatmul.bf16.gmra.mxu0 %v861
  %v1043 = vpop.f32.mrf.mxu0
  %v1044 = vadd.f32 %v782, %v1043
  %v1045 = vpop.f32.mrf.mxu0
  %v1046 = vadd.f32 %v782, %v1045
  %1047 = vmatmul.bf16.gmra.mxu0 %v864
  %v1048 = vpop.f32.mrf.mxu0
  %v1049 = vadd.f32 %v782, %v1048
  %v1050 = vpop.f32.mrf.mxu0
  %v1051 = vadd.f32 %v782, %v1050
  %1052 = vmatmul.bf16.gmra.mxu0 %v867
  %v1053 = vpop.f32.mrf.mxu0
  %v1054 = vadd.f32 %v782, %v1053
  %v1055 = vpop.f32.mrf.mxu0
  %v1056 = vadd.f32 %v782, %v1055
  %1057 = vmatmul.bf16.gmra.mxu0 %v870
  %v1058 = vpop.f32.mrf.mxu0
  %v1059 = vadd.f32 %v782, %v1058
  %v1060 = vpop.f32.mrf.mxu0
  %v1061 = vadd.f32 %v782, %v1060
  %1062 = vmatmul.bf16.gmra.mxu0 %v873
  %v1063 = vpop.f32.mrf.mxu0
  %v1064 = vadd.f32 %v782, %v1063
  %v1065 = vpop.f32.mrf.mxu0
  %v1066 = vadd.f32 %v782, %v1065
  %1067 = vmatmul.bf16.gmra.mxu0 %v876
  %v1068 = vpop.f32.mrf.mxu0
  %v1069 = vadd.f32 %v782, %v1068
  %v1070 = vpop.f32.mrf.mxu0
  %v1071 = vadd.f32 %v782, %v1070
  %1072 = vmatmul.bf16.gmra.mxu0 %v879
  %v1073 = vpop.f32.mrf.mxu0
  %v1074 = vadd.f32 %v782, %v1073
  %v1075 = vpop.f32.mrf.mxu0
  %v1076 = vadd.f32 %v782, %v1075
  %1077 = vmatmul.bf16.gmra.mxu0 %v882
  %v1078 = vpop.f32.mrf.mxu0
  %v1079 = vadd.f32 %v782, %v1078
  %v1080 = vpop.f32.mrf.mxu0
  %v1081 = vadd.f32 %v782, %v1080
  %1082 = vmatmul.bf16.gmra.mxu0 %v885
  %v1083 = vpop.f32.mrf.mxu0
  %v1084 = vadd.f32 %v782, %v1083
  %v1085 = vpop.f32.mrf.mxu0
  %v1086 = vadd.f32 %v782, %v1085
  %1087 = vmatmul.bf16.gmra.mxu0 %v888
  %v1088 = vpop.f32.mrf.mxu0
  %v1089 = vadd.f32 %v782, %v1088
  %v1090 = vpop.f32.mrf.mxu0
  %v1091 = vadd.f32 %v782, %v1090
  %1092 = vmatmul.bf16.gmra.mxu0 %v891
  %v1093 = vpop.f32.mrf.mxu0
  %v1094 = vadd.f32 %v782, %v1093
  %v1095 = vpop.f32.mrf.mxu0
  %v1096 = vadd.f32 %v782, %v1095
  %1097 = vmatmul.bf16.gmra.mxu0 %v894
  %v1098 = vpop.f32.mrf.mxu0
  %v1099 = vadd.f32 %v782, %v1098
  %v1100 = vpop.f32.mrf.mxu0
  %v1101 = vadd.f32 %v782, %v1100
  %1102 = vmatmul.bf16.gmra.mxu0 %v897
  %v1103 = vpop.f32.mrf.mxu0
  %v1104 = vadd.f32 %v782, %v1103
  %v1105 = vpop.f32.mrf.mxu0
  %v1106 = vadd.f32 %v782, %v1105
  %1107 = vmatmul.bf16.gmra.mxu0 %v900
  %v1108 = vpop.f32.mrf.mxu0
  %v1109 = vadd.f32 %v782, %v1108
  %v1110 = vpop.f32.mrf.mxu0
  %v1111 = vadd.f32 %v782, %v1110
  %1112 = vmatmul.bf16.gmra.mxu0 %v903
  %v1113 = vpop.f32.mrf.mxu0
  %v1114 = vadd.f32 %v782, %v1113
  %v1115 = vpop.f32.mrf.mxu0
  %v1116 = vadd.f32 %v782, %v1115
  %1117 = vdwg.mxu0
  %v1118 = vmax.f32 %v919, 0.0
  %v1119 = vmax.f32 %v921, 0.0
  %v1120 = vmax.f32 %v924, 0.0
  %v1121 = vmax.f32 %v926, 0.0
  %v1122 = vmax.f32 %v929, 0.0
  %v1123 = vmax.f32 %v931, 0.0
  %v1124 = vmax.f32 %v934, 0.0
  %v1125 = vmax.f32 %v936, 0.0
  %v1126 = vmax.f32 %v939, 0.0
  %v1127 = vmax.f32 %v941, 0.0
  %v1128 = vmax.f32 %v944, 0.0
  %v1129 = vmax.f32 %v946, 0.0
  %v1130 = vmax.f32 %v949, 0.0
  %v1131 = vmax.f32 %v951, 0.0
  %v1132 = vmax.f32 %v954, 0.0
  %v1133 = vmax.f32 %v956, 0.0
  %v1134 = vmax.f32 %v959, 0.0
  %v1135 = vmax.f32 %v961, 0.0
  %v1136 = vmax.f32 %v964, 0.0
  %v1137 = vmax.f32 %v966, 0.0
  %v1138 = vmax.f32 %v969, 0.0
  %v1139 = vmax.f32 %v971, 0.0
  %v1140 = vmax.f32 %v974, 0.0
  %v1141 = vmax.f32 %v976, 0.0
  %v1142 = vmax.f32 %v979, 0.0
  %v1143 = vmax.f32 %v981, 0.0
  %v1144 = vmax.f32 %v984, 0.0
  %v1145 = vmax.f32 %v986, 0.0
  %v1146 = vmax.f32 %v989, 0.0
  %v1147 = vmax.f32 %v991, 0.0
  %v1148 = vmax.f32 %v994, 0.0
  %v1149 = vmax.f32 %v996, 0.0
  %v1150 = vmax.f32 %v999, 0.0
  %v1151 = vmax.f32 %v1001, 0.0
  %v1152 = vmax.f32 %v1004, 0.0
  %v1153 = vmax.f32 %v1006, 0.0
  %v1154 = vmax.f32 %v1009, 0.0
  %v1155 = vmax.f32 %v1011, 0.0
  %v1156 = vmax.f32 %v1014, 0.0
  %v1157 = vmax.f32 %v1016, 0.0
  %v1158 = vmax.f32 %v1019, 0.0
  %v1159 = vmax.f32 %v1021, 0.0
  %v1160 = vmax.f32 %v1024, 0.0
  %v1161 = vmax.f32 %v1026, 0.0
  %v1162 = vmax.f32 %v1029, 0.0
  %v1163 = vmax.f32 %v1031, 0.0
  %v1164 = vmax.f32 %v1034, 0.0
  %v1165 = vmax.f32 %v1036, 0.0
  %v1166 = vmax.f32 %v1039, 0.0
  %v1167 = vmax.f32 %v1041, 0.0
  %v1168 = vmax.f32 %v1044, 0.0
  %v1169 = vmax.f32 %v1046, 0.0
  %v1170 = vmax.f32 %v1049, 0.0
  %v1171 = vmax.f32 %v1051, 0.0
  %v1172 = vmax.f32 %v1054, 0.0
  %v1173 = vmax.f32 %v1056, 0.0
  %v1174 = vmax.f32 %v1059, 0.0
  %v1175 = vmax.f32 %v1061, 0.0
  %v1176 = vmax.f32 %v1064, 0.0
  %v1177 = vmax.f32 %v1066, 0.0
  %v1178 = vmax.f32 %v1069, 0.0
  %v1179 = vmax.f32 %v1071, 0.0
  %v1180 = vmax.f32 %v1074, 0.0
  %v1181 = vmax.f32 %v1076, 0.0
  %v1182 = vmax.f32 %v1079, 0.0
  %v1183 = vmax.f32 %v1081, 0.0
  %v1184 = vmax.f32 %v1084, 0.0
  %v1185 = vmax.f32 %v1086, 0.0
  %v1186 = vmax.f32 %v1089, 0.0
  %v1187 = vmax.f32 %v1091, 0.0
  %v1188 = vmax.f32 %v1094, 0.0
  %v1189 = vmax.f32 %v1096, 0.0
  %v1190 = vmax.f32 %v1099, 0.0
  %v1191 = vmax.f32 %v1101, 0.0
  %v1192 = vmax.f32 %v1104, 0.0
  %v1193 = vmax.f32 %v1106, 0.0
  %v1194 = vmax.f32 %v1109, 0.0
  %v1195 = vmax.f32 %v1111, 0.0
  %v1196 = vmax.f32 %v1114, 0.0
  %v1197 = vmax.f32 %v1116, 0.0
  %v1198 = vpack.c.bf16 %v1118, %v1118
  %v1199 = vpack.c.bf16 %v1119, %v1119
  %v1200 = vpack.c.bf16 %v1120, %v1120
  %v1201 = vpack.c.bf16 %v1121, %v1121
  %v1202 = vpack.c.bf16 %v1122, %v1122
  %v1203 = vpack.c.bf16 %v1123, %v1123
  %v1204 = vpack.c.bf16 %v1124, %v1124
  %v1205 = vpack.c.bf16 %v1125, %v1125
  %v1206 = vpack.c.bf16 %v1126, %v1126
  %v1207 = vpack.c.bf16 %v1127, %v1127
  %v1208 = vpack.c.bf16 %v1128, %v1128
  %v1209 = vpack.c.bf16 %v1129, %v1129
  %v1210 = vpack.c.bf16 %v1130, %v1130
  %v1211 = vpack.c.bf16 %v1131, %v1131
  %v1212 = vpack.c.bf16 %v1132, %v1132
  %v1213 = vpack.c.bf16 %v1133, %v1133
  %v1214 = vpack.c.bf16 %v1134, %v1134
  %v1215 = vpack.c.bf16 %v1135, %v1135
  %v1216 = vpack.c.bf16 %v1136, %v1136
  %v1217 = vpack.c.bf16 %v1137, %v1137
  %v1218 = vpack.c.bf16 %v1138, %v1138
  %v1219 = vpack.c.bf16 %v1139, %v1139
  %v1220 = vpack.c.bf16 %v1140, %v1140
  %v1221 = vpack.c.bf16 %v1141, %v1141
  %v1222 = vpack.c.bf16 %v1142, %v1142
  %v1223 = vpack.c.bf16 %v1143, %v1143
  %v1224 = vpack.c.bf16 %v1144, %v1144
  %v1225 = vpack.c.bf16 %v1145, %v1145
  %v1226 = vpack.c.bf16 %v1146, %v1146
  %v1227 = vpack.c.bf16 %v1147, %v1147
  %v1228 = vpack.c.bf16 %v1148, %v1148
  %v1229 = vpack.c.bf16 %v1149, %v1149
  %v1230 = vpack.c.bf16 %v1150, %v1150
  %v1231 = vpack.c.bf16 %v1151, %v1151
  %v1232 = vpack.c.bf16 %v1152, %v1152
  %v1233 = vpack.c.bf16 %v1153, %v1153
  %v1234 = vpack.c.bf16 %v1154, %v1154
  %v1235 = vpack.c.bf16 %v1155, %v1155
  %v1236 = vpack.c.bf16 %v1156, %v1156
  %v1237 = vpack.c.bf16 %v1157, %v1157
  %v1238 = vpack.c.bf16 %v1158, %v1158
  %v1239 = vpack.c.bf16 %v1159, %v1159
  %v1240 = vpack.c.bf16 %v1160, %v1160
  %v1241 = vpack.c.bf16 %v1161, %v1161
  %v1242 = vpack.c.bf16 %v1162, %v1162
  %v1243 = vpack.c.bf16 %v1163, %v1163
  %v1244 = vpack.c.bf16 %v1164, %v1164
  %v1245 = vpack.c.bf16 %v1165, %v1165
  %v1246 = vpack.c.bf16 %v1166, %v1166
  %v1247 = vpack.c.bf16 %v1167, %v1167
  %v1248 = vpack.c.bf16 %v1168, %v1168
  %v1249 = vpack.c.bf16 %v1169, %v1169
  %v1250 = vpack.c.bf16 %v1170, %v1170
  %v1251 = vpack.c.bf16 %v1171, %v1171
  %v1252 = vpack.c.bf16 %v1172, %v1172
  %v1253 = vpack.c.bf16 %v1173, %v1173
  %v1254 = vpack.c.bf16 %v1174, %v1174
  %v1255 = vpack.c.bf16 %v1175, %v1175
  %v1256 = vpack.c.bf16 %v1176, %v1176
  %v1257 = vpack.c.bf16 %v1177, %v1177
  %v1258 = vpack.c.bf16 %v1178, %v1178
  %v1259 = vpack.c.bf16 %v1179, %v1179
  %v1260 = vpack.c.bf16 %v1180, %v1180
  %v1261 = vpack.c.bf16 %v1181, %v1181
  %v1262 = vpack.c.bf16 %v1182, %v1182
  %v1263 = vpack.c.bf16 %v1183, %v1183
  %v1264 = vpack.c.bf16 %v1184, %v1184
  %v1265 = vpack.c.bf16 %v1185, %v1185
  %v1266 = vpack.c.bf16 %v1186, %v1186
  %v1267 = vpack.c.bf16 %v1187, %v1187
  %v1268 = vpack.c.bf16 %v1188, %v1188
  %v1269 = vpack.c.bf16 %v1189, %v1189
  %v1270 = vpack.c.bf16 %v1190, %v1190
  %v1271 = vpack.c.bf16 %v1191, %v1191
  %v1272 = vpack.c.bf16 %v1192, %v1192
  %v1273 = vpack.c.bf16 %v1193, %v1193
  %v1274 = vpack.c.bf16 %v1194, %v1194
  %v1275 = vpack.c.bf16 %v1195, %v1195
  %v1276 = vpack.c.bf16 %v1196, %v1196
  %v1277 = vpack.c.bf16 %v1197, %v1197
  %vm1278 = vcmask 125952
  %1279 = vst.msk [vmem:[%s5] sm:$0xf] %vm1278, %v1198
  %1280 = vst.msk [vmem:[%s5 + $0x4] sm:$0xf] %vm1278, %v1199
  %1281 = vst.msk [vmem:[%s5 + $0x8] sm:$0xf] %vm1278, %v1200
  %1282 = vst.msk [vmem:[%s5 + $0xc] sm:$0xf] %vm1278, %v1201
  %1283 = vst.msk [vmem:[%s5 + $0x10] sm:$0xf] %vm1278, %v1202
  %1284 = vst.msk [vmem:[%s5 + $0x14] sm:$0xf] %vm1278, %v1203
  %1285 = vst.msk [vmem:[%s5 + $0x18] sm:$0xf] %vm1278, %v1204
  %1286 = vst.msk [vmem:[%s5 + $0x1c] sm:$0xf] %vm1278, %v1205
  %1287 = vst.msk [vmem:[%s5 + $0x20] sm:$0xf] %vm1278, %v1206
  %1288 = vst.msk [vmem:[%s5 + $0x24] sm:$0xf] %vm1278, %v1207
  %1289 = vst.msk [vmem:[%s5 + $0x28] sm:$0xf] %vm1278, %v1208
  %1290 = vst.msk [vmem:[%s5 + $0x2c] sm:$0xf] %vm1278, %v1209
  %1291 = vst.msk [vmem:[%s5 + $0x30] sm:$0xf] %vm1278, %v1210
  %1292 = vst.msk [vmem:[%s5 + $0x34] sm:$0xf] %vm1278, %v1211
  %1293 = vst.msk [vmem:[%s5 + $0x38] sm:$0xf] %vm1278, %v1212
  %1294 = vst.msk [vmem:[%s5 + $0x3c] sm:$0xf] %vm1278, %v1213
  %1295 = vst.msk [vmem:[%s5 + $0x40] sm:$0xf] %vm1278, %v1214
  %1296 = vst.msk [vmem:[%s5 + $0x44] sm:$0xf] %vm1278, %v1215
  %1297 = vst.msk [vmem:[%s5 + $0x48] sm:$0xf] %vm1278, %v1216
  %1298 = vst.msk [vmem:[%s5 + $0x4c] sm:$0xf] %vm1278, %v1217
  %1299 = vst.msk [vmem:[%s5 + $0x50] sm:$0xf] %vm1278, %v1218
  %1300 = vst.msk [vmem:[%s5 + $0x54] sm:$0xf] %vm1278, %v1219
  %1301 = vst.msk [vmem:[%s5 + $0x58] sm:$0xf] %vm1278, %v1220
  %1302 = vst.msk [vmem:[%s5 + $0x5c] sm:$0xf] %vm1278, %v1221
  %1303 = vst.msk [vmem:[%s5 + $0x60] sm:$0xf] %vm1278, %v1222
  %1304 = vst.msk [vmem:[%s5 + $0x64] sm:$0xf] %vm1278, %v1223
  %1305 = vst.msk [vmem:[%s5 + $0x68] sm:$0xf] %vm1278, %v1224
  %1306 = vst.msk [vmem:[%s5 + $0x6c] sm:$0xf] %vm1278, %v1225
  %1307 = vst.msk [vmem:[%s5 + $0x70] sm:$0xf] %vm1278, %v1226
  %1308 = vst.msk [vmem:[%s5 + $0x74] sm:$0xf] %vm1278, %v1227
  %1309 = vst.msk [vmem:[%s5 + $0x78] sm:$0xf] %vm1278, %v1228
  %1310 = vst.msk [vmem:[%s5 + $0x7c] sm:$0xf] %vm1278, %v1229
  %1311 = vst.msk [vmem:[%s5 + $0x80] sm:$0xf] %vm1278, %v1230
  %1312 = vst.msk [vmem:[%s5 + $0x84] sm:$0xf] %vm1278, %v1231
  %1313 = vst.msk [vmem:[%s5 + $0x88] sm:$0xf] %vm1278, %v1232
  %1314 = vst.msk [vmem:[%s5 + $0x8c] sm:$0xf] %vm1278, %v1233
  %1315 = vst.msk [vmem:[%s5 + $0x90] sm:$0xf] %vm1278, %v1234
  %1316 = vst.msk [vmem:[%s5 + $0x94] sm:$0xf] %vm1278, %v1235
  %1317 = vst.msk [vmem:[%s5 + $0x98] sm:$0xf] %vm1278, %v1236
  %1318 = vst.msk [vmem:[%s5 + $0x9c] sm:$0xf] %vm1278, %v1237
  %1319 = vst.msk [vmem:[%s5 + $0xa0] sm:$0xf] %vm1278, %v1238
  %1320 = vst.msk [vmem:[%s5 + $0xa4] sm:$0xf] %vm1278, %v1239
  %1321 = vst.msk [vmem:[%s5 + $0xa8] sm:$0xf] %vm1278, %v1240
  %1322 = vst.msk [vmem:[%s5 + $0xac] sm:$0xf] %vm1278, %v1241
  %1323 = vst.msk [vmem:[%s5 + $0xb0] sm:$0xf] %vm1278, %v1242
  %1324 = vst.msk [vmem:[%s5 + $0xb4] sm:$0xf] %vm1278, %v1243
  %1325 = vst.msk [vmem:[%s5 + $0xb8] sm:$0xf] %vm1278, %v1244
  %1326 = vst.msk [vmem:[%s5 + $0xbc] sm:$0xf] %vm1278, %v1245
  %1327 = vst.msk [vmem:[%s5 + $0xc0] sm:$0xf] %vm1278, %v1246
  %1328 = vst.msk [vmem:[%s5 + $0xc4] sm:$0xf] %vm1278, %v1247
  %1329 = vst.msk [vmem:[%s5 + $0xc8] sm:$0xf] %vm1278, %v1248
  %1330 = vst.msk [vmem:[%s5 + $0xcc] sm:$0xf] %vm1278, %v1249
  %1331 = vst.msk [vmem:[%s5 + $0xd0] sm:$0xf] %vm1278, %v1250
  %1332 = vst.msk [vmem:[%s5 + $0xd4] sm:$0xf] %vm1278, %v1251
  %1333 = vst.msk [vmem:[%s5 + $0xd8] sm:$0xf] %vm1278, %v1252
  %1334 = vst.msk [vmem:[%s5 + $0xdc] sm:$0xf] %vm1278, %v1253
  %1335 = vst.msk [vmem:[%s5 + $0xe0] sm:$0xf] %vm1278, %v1254
  %1336 = vst.msk [vmem:[%s5 + $0xe4] sm:$0xf] %vm1278, %v1255
  %1337 = vst.msk [vmem:[%s5 + $0xe8] sm:$0xf] %vm1278, %v1256
  %1338 = vst.msk [vmem:[%s5 + $0xec] sm:$0xf] %vm1278, %v1257
  %1339 = vst.msk [vmem:[%s5 + $0xf0] sm:$0xf] %vm1278, %v1258
  %1340 = vst.msk [vmem:[%s5 + $0xf4] sm:$0xf] %vm1278, %v1259
  %1341 = vst.msk [vmem:[%s5 + $0xf8] sm:$0xf] %vm1278, %v1260
  %1342 = vst.msk [vmem:[%s5 + $0xfc] sm:$0xf] %vm1278, %v1261
  %1343 = vst.msk [vmem:[%s5 + $0x100] sm:$0xf] %vm1278, %v1262
  %1344 = vst.msk [vmem:[%s5 + $0x104] sm:$0xf] %vm1278, %v1263
  %1345 = vst.msk [vmem:[%s5 + $0x108] sm:$0xf] %vm1278, %v1264
  %1346 = vst.msk [vmem:[%s5 + $0x10c] sm:$0xf] %vm1278, %v1265
  %1347 = vst.msk [vmem:[%s5 + $0x110] sm:$0xf] %vm1278, %v1266
  %1348 = vst.msk [vmem:[%s5 + $0x114] sm:$0xf] %vm1278, %v1267
  %1349 = vst.msk [vmem:[%s5 + $0x118] sm:$0xf] %vm1278, %v1268
  %1350 = vst.msk [vmem:[%s5 + $0x11c] sm:$0xf] %vm1278, %v1269
  %1351 = vst.msk [vmem:[%s5 + $0x120] sm:$0xf] %vm1278, %v1270
  %1352 = vst.msk [vmem:[%s5 + $0x124] sm:$0xf] %vm1278, %v1271
  %1353 = vst.msk [vmem:[%s5 + $0x128] sm:$0xf] %vm1278, %v1272
  %1354 = vst.msk [vmem:[%s5 + $0x12c] sm:$0xf] %vm1278, %v1273
  %1355 = vst.msk [vmem:[%s5 + $0x130] sm:$0xf] %vm1278, %v1274
  %1356 = vst.msk [vmem:[%s5 + $0x134] sm:$0xf] %vm1278, %v1275
  %1357 = vst.msk [vmem:[%s5 + $0x138] sm:$0xf] %vm1278, %v1276
  %1358 = vst.msk [vmem:[%s5 + $0x13c] sm:$0xf] %vm1278, %v1277
  // Predicated region
  $region22: #{qfnet_forward.2} parent=0 // pred_check
    _
  $region23: #{qfnet_forward.2} parent=0 // pred_check_branch
    %1360 = sbr.rel (0) target = $region25
  $region24: #{qfnet_forward.2} parent=0 // pred_region
    _
  $region25: #{qfnet_forward.2} parent=0 // pred_fallthru
    _
  // Predicated region
  $region26: #{qfnet_forward.2} parent=0 // pred_check
    _
  $region27: #{qfnet_forward.2} parent=0 // pred_check_branch
    %1362 = sbr.rel (0) target = $region29
  $region28: #{qfnet_forward.2} parent=0 // pred_region
    _
  $region29: #{qfnet_forward.2} parent=0 // pred_fallthru
    _

// kernel: qfnet_forward.3
$region0: #{qfnet_forward.3}
  #allocation0 [shape = 'u32[]', space=smem, size = 0x4, offset = 0x4, fixed_abs, tag = 'smem constant byte address 0x4 - core index']
  #allocation1 [shape = 'u32[72,128]{1,0:T(1,128)}', space=vmem, size = 0x9000, scoped, tag = 'internal scratch']
  %s0 = inlined_call_operand.vmem [shape: bf16[2,64,16], index: 0, kind: input, shape index: {}]
  %s1 = inlined_call_operand.vmem [shape: bf16[2,16,256], index: 1, kind: input, shape index: {}]
  %s2 = inlined_call_operand.vmem [shape: bf16[96,64], index: 2, kind: input, shape index: {}]
  %s3 = inlined_call_operand.vmem [shape: f32[96,1], index: 3, kind: input, shape index: {}]
  %s4 = inlined_call_operand.vmem [shape: bf16[3,96], index: 4, kind: input, shape index: {}]
  %s5 = inlined_call_operand.vmem [shape: f32[3,1], index: 5, kind: input, shape index: {}]
  %s6 = inlined_call_operand.vmem [shape: f32[2,3,256], index: 6, kind: output, shape index: {}]
  %s7 = sld [smem:[#allocation0]]
  $region57: #{qfnet_forward.3} parent=0
    _
  %s9 = ssub.s32 1, %s7
  %s10 = scalar_select 0, %s9, %s7
  loop: start=0, step=1, limit=4
  $region2: #{qfnet_forward.3} parent=0 // loop_pre_header
    _
  $region3: #{qfnet_forward.3} parent=0 // loop_header
    %s12 = sphi 0, %s16
    %p13 = scmp.ge.s32.totalorder %s12, 4
    %s22 = sphi 0, %s24
    %s25 = sphi 0, %s22
    %s26 = sphi 0, %s25
    %s42 = sphi 0, %s26
    %s48 = sphi 0, %s50
    %s51 = sphi 0, %s48
    %s52 = sphi 0, %s51
    %s68 = sphi 0, %s52
    %s72 = sphi 0, %s72
    %s74 = sphi 0, %s72
    %s75 = sphi 0, %s74
    %s89 = sphi 0, %s75
    %s93 = sphi 0, %s93
    %s95 = sphi 0, %s93
    %s96 = sphi 0, %s95
    %s110 = sphi 0, %s96
    %s114 = sphi 0, %s114
    %s116 = sphi 0, %s114
    %s117 = sphi 0, %s116
    %s131 = sphi 0, %s117
    %s135 = sphi 0, %s135
    %s137 = sphi 0, %s135
    %s138 = sphi 0, %s137
    %s152 = sphi 0, %s138
    %s158 = sphi 0, %s160
    %s161 = sphi 0, %s158
    %s162 = sphi 0, %s161
    %s178 = sphi 0, %s162
  $region4: #{qfnet_forward.3} parent=0 // loop_header_branch
    %15 = sbr.rel (%p13) target = $region8
  $region5: #{qfnet_forward.3} parent=0 // loop_body
    %s17 = ssub.s32 %s12, 1
    %s18 = ssub.s32 %s12, 2
    %s19 = sadd.s32 %s12, 1
    %s20 = ssub.s32 %s12, %s19
    %p21 = scmp.eq.s32.totalorder %s20, 0
    %s23 = sadd.s32 %s22, 1
    %s24 = scalar_select %p21, %s22, %s23
    %p27 = pneg %p21
    %p28 = scmp.eq.s32.totalorder %s12, 1
    %p29 = por %p27, %p28
    %p30 = scmp.ne.s32.totalorder %s22, %s25
    %p31 = scmp.eq.s32.totalorder %s12, 0
    %p32 = por %p30, %p31
    %p33 = scmp.ne.s32.totalorder %s22, %s25
    %p34 = scmp.eq.s32.totalorder %s17, 1
    %p35 = por %p33, %p34
    %p36 = scmp.ne.s32.totalorder %s25, %s26
    %p37 = scmp.eq.s32.totalorder %s17, 0
    %p38 = por %p36, %p37
    %p39 = scmp.ne.s32.totalorder %s25, %s26
    %p40 = scmp.eq.s32.totalorder %s18, 1
    %p41 = por %p39, %p40
    %p43 = scmp.ne.s32.totalorder %s26, %s42
    %p44 = scmp.eq.s32.totalorder %s18, 0
    %p45 = por %p43, %p44
    %s46 = ssub.s32 %s12, %s19
    %p47 = scmp.eq.s32.totalorder %s46, 0
    %s49 = sadd.s32 %s48, 1
    %s50 = scalar_select %p47, %s48, %s49
    %p53 = pneg %p47
    %p54 = scmp.eq.s32.totalorder %s12, 1
    %p55 = por %p53, %p54
    %p56 = scmp.ne.s32.totalorder %s48, %s51
    %p57 = scmp.eq.s32.totalorder %s12, 0
    %p58 = por %p56, %p57
    %p59 = scmp.ne.s32.totalorder %s48, %s51
    %p60 = scmp.eq.s32.totalorder %s17, 1
    %p61 = por %p59, %p60
    %p62 = scmp.ne.s32.totalorder %s51, %s52
    %p63 = scmp.eq.s32.totalorder %s17, 0
    %p64 = por %p62, %p63
    %p65 = scmp.ne.s32.totalorder %s51, %s52
    %p66 = scmp.eq.s32.totalorder %s18, 1
    %p67 = por %p65, %p66
    %p69 = scmp.ne.s32.totalorder %s52, %s68
    %p70 = scmp.eq.s32.totalorder %s18, 0
    %p71 = por %p69, %p70
    %s73 = sadd.s32 %s72, 1
    %p76 = scmp.eq.s32.totalorder %s12, 1
    %p77 = scmp.ne.s32.totalorder %s72, %s74
    %p78 = scmp.eq.s32.totalorder %s12, 0
    %p79 = por %p77, %p78
    %p80 = scmp.ne.s32.totalorder %s72, %s74
    %p81 = scmp.eq.s32.totalorder %s17, 1
    %p82 = por %p80, %p81
    %p83 = scmp.ne.s32.totalorder %s74, %s75
    %p84 = scmp.eq.s32.totalorder %s17, 0
    %p85 = por %p83, %p84
    %p86 = scmp.ne.s32.totalorder %s74, %s75
    %p87 = scmp.eq.s32.totalorder %s18, 1
    %p88 = por %p86, %p87
    %p90 = scmp.ne.s32.totalorder %s75, %s89
    %p91 = scmp.eq.s32.totalorder %s18, 0
    %p92 = por %p90, %p91
    %s94 = sadd.s32 %s93, 1
    %p97 = scmp.eq.s32.totalorder %s12, 1
    %p98 = scmp.ne.s32.totalorder %s93, %s95
    %p99 = scmp.eq.s32.totalorder %s12, 0
    %p100 = por %p98, %p99
    %p101 = scmp.ne.s32.totalorder %s93, %s95
    %p102 = scmp.eq.s32.totalorder %s17, 1
    %p103 = por %p101, %p102
    %p104 = scmp.ne.s32.totalorder %s95, %s96
    %p105 = scmp.eq.s32.totalorder %s17, 0
    %p106 = por %p104, %p105
    %p107 = scmp.ne.s32.totalorder %s95, %s96
    %p108 = scmp.eq.s32.totalorder %s18, 1
    %p109 = por %p107, %p108
    %p111 = scmp.ne.s32.totalorder %s96, %s110
    %p112 = scmp.eq.s32.totalorder %s18, 0
    %p113 = por %p111, %p112
    %s115 = sadd.s32 %s114, 1
    %p118 = scmp.eq.s32.totalorder %s12, 1
    %p119 = scmp.ne.s32.totalorder %s114, %s116
    %p120 = scmp.eq.s32.totalorder %s12, 0
    %p121 = por %p119, %p120
    %p122 = scmp.ne.s32.totalorder %s114, %s116
    %p123 = scmp.eq.s32.totalorder %s17, 1
    %p124 = por %p122, %p123
    %p125 = scmp.ne.s32.totalorder %s116, %s117
    %p126 = scmp.eq.s32.totalorder %s17, 0
    %p127 = por %p125, %p126
    %p128 = scmp.ne.s32.totalorder %s116, %s117
    %p129 = scmp.eq.s32.totalorder %s18, 1
    %p130 = por %p128, %p129
    %p132 = scmp.ne.s32.totalorder %s117, %s131
    %p133 = scmp.eq.s32.totalorder %s18, 0
    %p134 = por %p132, %p133
    %s136 = sadd.s32 %s135, 1
    %p139 = scmp.eq.s32.totalorder %s12, 1
    %p140 = scmp.ne.s32.totalorder %s135, %s137
    %p141 = scmp.eq.s32.totalorder %s12, 0
    %p142 = por %p140, %p141
    %p143 = scmp.ne.s32.totalorder %s135, %s137
    %p144 = scmp.eq.s32.totalorder %s17, 1
    %p145 = por %p143, %p144
    %p146 = scmp.ne.s32.totalorder %s137, %s138
    %p147 = scmp.eq.s32.totalorder %s17, 0
    %p148 = por %p146, %p147
    %p149 = scmp.ne.s32.totalorder %s137, %s138
    %p150 = scmp.eq.s32.totalorder %s18, 1
    %p151 = por %p149, %p150
    %p153 = scmp.ne.s32.totalorder %s138, %s152
    %p154 = scmp.eq.s32.totalorder %s18, 0
    %p155 = por %p153, %p154
    %s156 = ssub.s32 %s12, %s19
    %p157 = scmp.eq.s32.totalorder %s156, 0
    %s159 = sadd.s32 %s158, 1
    %s160 = scalar_select %p157, %s158, %s159
    %p163 = pneg %p157
    %p164 = scmp.eq.s32.totalorder %s12, 1
    %p165 = por %p163, %p164
    %p166 = scmp.ne.s32.totalorder %s158, %s161
    %p167 = scmp.eq.s32.totalorder %s12, 0
    %p168 = por %p166, %p167
    %p169 = scmp.ne.s32.totalorder %s158, %s161
    %p170 = scmp.eq.s32.totalorder %s17, 1
    %p171 = por %p169, %p170
    %p172 = scmp.ne.s32.totalorder %s161, %s162
    %p173 = scmp.eq.s32.totalorder %s17, 0
    %p174 = por %p172, %p173
    %p175 = scmp.ne.s32.totalorder %s161, %s162
    %p176 = scmp.eq.s32.totalorder %s18, 1
    %p177 = por %p175, %p176
    %p179 = scmp.ne.s32.totalorder %s162, %s178
    %p180 = scmp.eq.s32.totalorder %s18, 0
    %p181 = por %p179, %p180
    %p182 = scmp.le.s32.totalorder 1, %s12
    %p183 = scmp.lt.s32.totalorder %s12, 3
    %p184 = pnand %p182, %p183
    %p185 = pneg %p184
    // Predicated region
    $region9: #{qfnet_forward.3} parent=5 // pred_check
      _
    $region10: #{qfnet_forward.3} parent=5 // pred_check_branch
      %187 = sbr.rel (%p184) target = $region12
    $region11: #{qfnet_forward.3} parent=5 // pred_region
      %s188 = ssub.s32 %s12, 1
      // Predicated region
      $region13: #{qfnet_forward.3} parent=11 // pred_check
        %p189 = pneg %p85
      $region14: #{qfnet_forward.3} parent=11 // pred_check_branch
        %191 = sbr.rel (%p189) target = $region16
      $region15: #{qfnet_forward.3} parent=11 // pred_region
        _
      $region16: #{qfnet_forward.3} parent=11 // pred_fallthru
        _
      // Predicated region
      $region17: #{qfnet_forward.3} parent=11 // pred_check
        %p192 = pneg %p106
      $region18: #{qfnet_forward.3} parent=11 // pred_check_branch
        %194 = sbr.rel (%p192) target = $region20
      $region19: #{qfnet_forward.3} parent=11 // pred_region
        _
      $region20: #{qfnet_forward.3} parent=11 // pred_fallthru
        _
      // Predicated region
      $region21: #{qfnet_forward.3} parent=11 // pred_check
        %p195 = pneg %p127
      $region22: #{qfnet_forward.3} parent=11 // pred_check_branch
        %197 = sbr.rel (%p195) target = $region24
      $region23: #{qfnet_forward.3} parent=11 // pred_region
        _
      $region24: #{qfnet_forward.3} parent=11 // pred_fallthru
        _
      // Predicated region
      $region25: #{qfnet_forward.3} parent=11 // pred_check
        %p198 = pneg %p148
      $region26: #{qfnet_forward.3} parent=11 // pred_check_branch
        %200 = sbr.rel (%p198) target = $region28
      $region27: #{qfnet_forward.3} parent=11 // pred_region
        _
      $region28: #{qfnet_forward.3} parent=11 // pred_fallthru
        _
    $region12: #{qfnet_forward.3} parent=5 // pred_fallthru
      _
    %p201 = scmp.lt.s32.totalorder %s12, 2
    // Predicated region
    $region29: #{qfnet_forward.3} parent=5 // pred_check
      %p202 = pneg %p201
    $region30: #{qfnet_forward.3} parent=5 // pred_check_branch
      %204 = sbr.rel (%p202) target = $region32
    $region31: #{qfnet_forward.3} parent=5 // pred_region
      // Predicated region
      $region33: #{qfnet_forward.3} parent=31 // pred_check
        %p205 = pneg %p32
      $region34: #{qfnet_forward.3} parent=31 // pred_check_branch
        %207 = sbr.rel (%p205) target = $region36
      $region35: #{qfnet_forward.3} parent=31 // pred_region
        %p208 = scmp.lt.s32.totalorder %s12, 1
        %s209 = scalar_select %p208, %s12, 1
        %s210 = smul.addr %s209, 8
        %s211 = smul.addr %s210, 4
        %s212 = scalar_lea.vmem %s0, %s211
      $region36: #{qfnet_forward.3} parent=31 // pred_fallthru
        _
      // Predicated region
      $region37: #{qfnet_forward.3} parent=31 // pred_check
        %p213 = pneg %p58
      $region38: #{qfnet_forward.3} parent=31 // pred_check_branch
        %215 = sbr.rel (%p213) target = $region40
      $region39: #{qfnet_forward.3} parent=31 // pred_region
        %p216 = scmp.lt.s32.totalorder %s12, 1
        %s217 = scalar_select %p216, %s12, 1
        %s218 = smul.addr %s217, 4
        %s219 = smul.addr %s218, 4
        %s220 = scalar_lea.vmem %s1, %s219
      $region40: #{qfnet_forward.3} parent=31 // pred_fallthru
        _
    $region32: #{qfnet_forward.3} parent=5 // pred_fallthru
      _
    %p221 = scmp.le.s32.totalorder 1, %s12
    %p222 = scmp.lt.s32.totalorder %s12, 3
    %p223 = pnand %p221, %p222
    %p224 = pneg %p223
    // Predicated region
    $region41: #{qfnet_forward.3} parent=5 // pred_check
      _
    $region42: #{qfnet_forward.3} parent=5 // pred_check_branch
      %226 = sbr.rel (%p223) target = $region44
    $region43: #{qfnet_forward.3} parent=5 // pred_region
      %s227 = ssub.s32 %s12, 1
      %p228 = scmp.lt.s32.totalorder %s17, 1
      %s229 = scalar_select %p228, %s17, 1
      %s230 = smul.addr %s229, 8
      %s231 = smul.addr %s230, 4
      %s232 = scalar_lea.vmem %s0, %s231
      %p233 = pneg %p38
      %p234 = pneg %p35
      %p235 = scmp.lt.s32.totalorder %s17, 1
      %s236 = scalar_select %p235, %s17, 1
      %s237 = smul.addr %s236, 4
      %s238 = smul.addr %s237, 4
      %s239 = scalar_lea.vmem %s1, %s238
      %p240 = pneg %p64
      %p241 = pneg %p61
      %p242 = pneg %p85
      %p243 = pneg %p82
      %p244 = pneg %p106
      %p245 = pneg %p103
      %p246 = pneg %p127
      %p247 = pneg %p124
      %p248 = pneg %p148
      %p249 = pneg %p145
      %p250 = pneg %p174
      %p251 = pneg %p171
      %p252 = scmp.lt.s32.totalorder %s17, 1
      %s253 = scalar_select %p252, %s17, 1
      %s254 = smul.addr %s253, 2
      %s255 = smul.addr %s254, 4
      %s256 = scalar_lea.vmem %s6, %s255
      %p257 = scmp.lt.s32.totalorder %s17, 1
      %s258 = scalar_select %p257, %s17, 1
      %s259 = smul.addr %s258, 8
      %s260 = smul.addr %s259, 4
      %s261 = scalar_lea.vmem %s0, %s260
      %p262 = scmp.lt.s32.totalorder %s17, 1
      %s263 = scalar_select %p262, %s17, 1
      %s264 = smul.addr %s263, 4
      %s265 = smul.addr %s264, 4
      %s266 = scalar_lea.vmem %s1, %s265
      %p267 = scmp.lt.s32.totalorder %s17, 1
      %s268 = scalar_select %p267, %s17, 1
      %s269 = smul.addr %s268, 2
      %s270 = smul.addr %s269, 4
      %s271 = scalar_lea.vmem %s6, %s270
      %v273 = vld [vmem:[%s261] sm:$0xf]
      %v274 = vld [vmem:[%s261 + $0x4] sm:$0xf]
      %v275 = vld [vmem:[%s261 + $0x8] sm:$0xf]
      %v276 = vld [vmem:[%s261 + $0xc] sm:$0xf]
      %v277 = vld [vmem:[%s261 + $0x10] sm:$0xf]
      %v278 = vld [vmem:[%s261 + $0x14] sm:$0xf]
      %v279 = vld [vmem:[%s261 + $0x18] sm:$0xf]
      %v280 = vld [vmem:[%s261 + $0x1c] sm:$0xf]
      %v281 = vld [vmem:[%s266] sm:$0xff]
      %v282 = vld [vmem:[%s266 + $0x8] sm:$0xff]
      %v291 = vunpack.c.l.b16 %v273
      %v292 = vunpack.c.l.b16 %v274
      %v293 = vunpack.c.l.b16 %v275
      %v294 = vunpack.c.l.b16 %v276
      %v295 = vunpack.c.l.b16 %v277
      %v296 = vunpack.c.l.b16 %v278
      %v297 = vunpack.c.l.b16 %v279
      %v298 = vunpack.c.l.b16 %v280
      %v299 = vpack.c.b16 %v292, %v291
      %v300 = vpack.c.b16 %v294, %v293
      %v301 = vpack.c.b16 %v296, %v295
      %v302 = vpack.c.b16 %v298, %v297
      %v305 = vunpack.c.l.b16 %v281
      %v306 = vunpack.c.h.b16 %v281
      %v307 = vunpack.c.l.b16 %v282
      %v308 = vunpack.c.h.b16 %v282
      %v309 = vpack.c.b16 %v307, %v305
      %v310 = vpack.c.b16 %v308, %v306
      %vm313 = vcmask 130048
      %v315 = vsel %vm313, %v299, 0
      %v318 = vsel %vm313, %v300, 0
      %v321 = vsel %vm313, %v301, 0
      %v324 = vsel %vm313, %v302, 0
      %326 = vmatpush.bf16.msra.mxu0 0
      %327 = vmatpush.bf16.msra.mxu0 0
      %328 = vmatpush.bf16.msra.mxu0 0
      %329 = vmatpush.bf16.msra.mxu0 0
      %330 = vmatpush.bf16.msra.mxu0 0
      %331 = vmatpush.bf16.msra.mxu0 0
      %332 = vmatpush.bf16.msra.mxu0 0
      %333 = vmatpush.bf16.msra.mxu0 %v309
      %334 = vmatmul.bf16.gmra.mxu0 %v315
      %v335 = vpop.f32.mrf.mxu0
      %v336 = vadd.f32 0.0, %v335
      %v337 = vpop.f32.mrf.mxu0
      %v338 = vadd.f32 0.0, %v337
      %339 = vmatmul.bf16.gmra.mxu0 %v318
      %v340 = vpop.f32.mrf.mxu0
      %v341 = vadd.f32 0.0, %v340
      %v342 = vpop.f32.mrf.mxu0
      %v343 = vadd.f32 0.0, %v342
      %344 = vmatmul.bf16.gmra.mxu0 %v321
      %v345 = vpop.f32.mrf.mxu0
      %v346 = vadd.f32 0.0, %v345
      %v347 = vpop.f32.mrf.mxu0
      %v348 = vadd.f32 0.0, %v347
      %349 = vmatmul.bf16.gmra.mxu0 %v324
      %v350 = vpop.f32.mrf.mxu0
      %v351 = vadd.f32 0.0, %v350
      %v352 = vpop.f32.mrf.mxu0
      %v353 = vadd.f32 0.0, %v352
      %354 = vdwg.mxu0
      %355 = vmatpush.bf16.msra.mxu0 0
      %356 = vmatpush.bf16.msra.mxu0 0
      %357 = vmatpush.bf16.msra.mxu0 0
      %358 = vmatpush.bf16.msra.mxu0 0
      %359 = vmatpush.bf16.msra.mxu0 0
      %360 = vmatpush.bf16.msra.mxu0 0
      %361 = vmatpush.bf16.msra.mxu0 0
      %362 = vmatpush.bf16.msra.mxu0 %v310
      %363 = vmatmul.bf16.gmra.mxu0 %v315
      %v364 = vpop.f32.mrf.mxu0
      %v365 = vadd.f32 0.0, %v364
      %v366 = vpop.f32.mrf.mxu0
      %v367 = vadd.f32 0.0, %v366
      %368 = vmatmul.bf16.gmra.mxu0 %v318
      %v369 = vpop.f32.mrf.mxu0
      %v370 = vadd.f32 0.0, %v369
      %v371 = vpop.f32.mrf.mxu0
      %v372 = vadd.f32 0.0, %v371
      %373 = vmatmul.bf16.gmra.mxu0 %v321
      %v374 = vpop.f32.mrf.mxu0
      %v375 = vadd.f32 0.0, %v374
      %v376 = vpop.f32.mrf.mxu0
      %v377 = vadd.f32 0.0, %v376
      %378 = vmatmul.bf16.gmra.mxu0 %v324
      %v379 = vpop.f32.mrf.mxu0
      %v380 = vadd.f32 0.0, %v379
      %v381 = vpop.f32.mrf.mxu0
      %v382 = vadd.f32 0.0, %v381
      %383 = vdwg.mxu0
      %v384 = vld [vmem:[%s2] sm:$0xf]
      %v385 = vld [vmem:[%s2 + $0x4] sm:$0xf]
      %v386 = vld [vmem:[%s2 + $0x8] sm:$0xf]
      %v387 = vld [vmem:[%s2 + $0xc] sm:$0xf]
      %v388 = vld [vmem:[%s2 + $0x10] sm:$0xf]
      %v389 = vld [vmem:[%s2 + $0x14] sm:$0xf]
      %v390 = vld [vmem:[%s2 + $0x18] sm:$0xf]
      %v391 = vld [vmem:[%s2 + $0x1c] sm:$0xf]
      %v392 = vld [vmem:[%s2 + $0x20] sm:$0xf]
      %v393 = vld [vmem:[%s2 + $0x24] sm:$0xf]
      %v394 = vld [vmem:[%s2 + $0x28] sm:$0xf]
      %v395 = vld [vmem:[%s2 + $0x2c] sm:$0xf]
      %v396 = vpack.c.bf16 %v338, %v336
      %v397 = vpack.c.bf16 %v367, %v365
      %v398 = vpack.c.bf16 %v343, %v341
      %v399 = vpack.c.bf16 %v372, %v370
      %v400 = vpack.c.bf16 %v348, %v346
      %v401 = vpack.c.bf16 %v377, %v375
      %v402 = vpack.c.bf16 %v353, %v351
      %v403 = vpack.c.bf16 %v382, %v380
      %v404 = vld [vmem:[%s3] sm:$0xff]
      %v405 = vld [vmem:[%s3 + $0x8] sm:$0xff]
      %v406 = vld [vmem:[%s3 + $0x10] sm:$0xff]
      %v407 = vld [vmem:[%s3 + $0x18] sm:$0xff]
      %v408 = vld [vmem:[%s3 + $0x20] sm:$0xff]
      %v409 = vld [vmem:[%s3 + $0x28] sm:$0xff]
      %v410 = vld [vmem:[%s3 + $0x30] sm:$0xff]
      %v411 = vld [vmem:[%s3 + $0x38] sm:$0xff]
      %v412 = vld [vmem:[%s3 + $0x40] sm:$0xff]
      %v413 = vld [vmem:[%s3 + $0x48] sm:$0xff]
      %v414 = vld [vmem:[%s3 + $0x50] sm:$0xff]
      %v415 = vld [vmem:[%s3 + $0x58] sm:$0xff]
      %417 = vset.pattern.permute.xlu0 0
      %418 = vperm.xlu0 %417, %v404
      %v419 = vpop.permute.xlu0 %418
      %422 = vset.pattern.permute.xlu0 0
      %423 = vperm.xlu0 %422, %v405
      %v424 = vpop.permute.xlu0 %423
      %427 = vset.pattern.permute.xlu0 0
      %428 = vperm.xlu0 %427, %v406
      %v429 = vpop.permute.xlu0 %428
      %432 = vset.pattern.permute.xlu0 0
      %433 = vperm.xlu0 %432, %v407
      %v434 = vpop.permute.xlu0 %433
      %437 = vset.pattern.permute.xlu0 0
      %438 = vperm.xlu0 %437, %v408
      %v439 = vpop.permute.xlu0 %438
      %442 = vset.pattern.permute.xlu0 0
      %443 = vperm.xlu0 %442, %v409
      %v444 = vpop.permute.xlu0 %443
      %447 = vset.pattern.permute.xlu0 0
      %448 = vperm.xlu0 %447, %v410
      %v449 = vpop.permute.xlu0 %448
      %452 = vset.pattern.permute.xlu0 0
      %453 = vperm.xlu0 %452, %v411
      %v454 = vpop.permute.xlu0 %453
      %457 = vset.pattern.permute.xlu0 0
      %458 = vperm.xlu0 %457, %v412
      %v459 = vpop.permute.xlu0 %458
      %462 = vset.pattern.permute.xlu0 0
      %463 = vperm.xlu0 %462, %v413
      %v464 = vpop.permute.xlu0 %463
      %467 = vset.pattern.permute.xlu0 0
      %468 = vperm.xlu0 %467, %v414
      %v469 = vpop.permute.xlu0 %468
      %472 = vset.pattern.permute.xlu0 0
      %473 = vperm.xlu0 %472, %v415
      %v474 = vpop.permute.xlu0 %473
      %v488 = vunpack.c.l.b16 %v384
      %v489 = vunpack.c.l.b16 %v385
      %v490 = vunpack.c.l.b16 %v386
      %v491 = vunpack.c.l.b16 %v387
      %v492 = vunpack.c.l.b16 %v388
      %v493 = vunpack.c.l.b16 %v389
      %v494 = vunpack.c.l.b16 %v390
      %v495 = vunpack.c.l.b16 %v391
      %v496 = vunpack.c.l.b16 %v392
      %v497 = vunpack.c.l.b16 %v393
      %v498 = vunpack.c.l.b16 %v394
      %v499 = vunpack.c.l.b16 %v395
      %v500 = vpack.c.b16 %v489, %v488
      %v501 = vpack.c.b16 %v491, %v490
      %v502 = vpack.c.b16 %v493, %v492
      %v503 = vpack.c.b16 %v495, %v494
      %v504 = vpack.c.b16 %v497, %v496
      %v505 = vpack.c.b16 %v499, %v498
      %vm506 = vcmask 523264
      %v508 = vsel %vm506, %v500, 0
      %v511 = vsel %vm506, %v501, 0
      %v514 = vsel %vm506, %v502, 0
      %v517 = vsel %vm506, %v503, 0
      %v520 = vsel %vm506, %v504, 0
      %v523 = vsel %vm506, %v505, 0
      %525 = vmatpush.bf16.msra.mxu0 0
      %526 = vmatpush.bf16.msra.mxu0 0
      %527 = vmatpush.bf16.msra.mxu0 0
      %528 = vmatpush.bf16.msra.mxu0 0
      %529 = vmatpush.bf16.msra.mxu0 %v402
      %530 = vmatpush.bf16.msra.mxu0 %v400
      %531 = vmatpush.bf16.msra.mxu0 %v398
      %532 = vmatpush.bf16.msra.mxu0 %v396
      %533 = vmatmul.bf16.gmra.mxu0 %v508
      %v534 = vpop.f32.mrf.mxu0
      %v535 = vadd.f32 %v419, %v534
      %v536 = vpop.f32.mrf.mxu0
      %v537 = vadd.f32 %v424, %v536
      %538 = vmatmul.bf16.gmra.mxu0 %v511
      %v539 = vpop.f32.mrf.mxu0
      %v540 = vadd.f32 %v429, %v539
      %v541 = vpop.f32.mrf.mxu0
      %v542 = vadd.f32 %v434, %v541
      %543 = vmatmul.bf16.gmra.mxu0 %v514
      %v544 = vpop.f32.mrf.mxu0
      %v545 = vadd.f32 %v439, %v544
      %v546 = vpop.f32.mrf.mxu0
      %v547 = vadd.f32 %v444, %v546
      %548 = vmatmul.bf16.gmra.mxu0 %v517
      %v549 = vpop.f32.mrf.mxu0
      %v550 = vadd.f32 %v449, %v549
      %v551 = vpop.f32.mrf.mxu0
      %v552 = vadd.f32 %v454, %v551
      %553 = vmatmul.bf16.gmra.mxu0 %v520
      %v554 = vpop.f32.mrf.mxu0
      %v555 = vadd.f32 %v459, %v554
      %v556 = vpop.f32.mrf.mxu0
      %v557 = vadd.f32 %v464, %v556
      %558 = vmatmul.bf16.gmra.mxu0 %v523
      %v559 = vpop.f32.mrf.mxu0
      %v560 = vadd.f32 %v469, %v559
      %v561 = vpop.f32.mrf.mxu0
      %v562 = vadd.f32 %v474, %v561
      %563 = vdwg.mxu0
      %564 = vmatpush.bf16.msra.mxu0 0
      %565 = vmatpush.bf16.msra.mxu0 0
      %566 = vmatpush.bf16.msra.mxu0 0
      %567 = vmatpush.bf16.msra.mxu0 0
      %568 = vmatpush.bf16.msra.mxu0 %v403
      %569 = vmatpush.bf16.msra.mxu0 %v401
      %570 = vmatpush.bf16.msra.mxu0 %v399
      %571 = vmatpush.bf16.msra.mxu0 %v397
      %572 = vmatmul.bf16.gmra.mxu0 %v508
      %v573 = vpop.f32.mrf.mxu0
      %v574 = vadd.f32 %v419, %v573
      %v575 = vpop.f32.mrf.mxu0
      %v576 = vadd.f32 %v424, %v575
      %577 = vmatmul.bf16.gmra.mxu0 %v511
      %v578 = vpop.f32.mrf.mxu0
      %v579 = vadd.f32 %v429, %v578
      %v580 = vpop.f32.mrf.mxu0
      %v581 = vadd.f32 %v434, %v580
      %582 = vmatmul.bf16.gmra.mxu0 %v514
      %v583 = vpop.f32.mrf.mxu0
      %v584 = vadd.f32 %v439, %v583
      %v585 = vpop.f32.mrf.mxu0
      %v586 = vadd.f32 %v444, %v585
      %587 = vmatmul.bf16.gmra.mxu0 %v517
      %v588 = vpop.f32.mrf.mxu0
      %v589 = vadd.f32 %v449, %v588
      %v590 = vpop.f32.mrf.mxu0
      %v591 = vadd.f32 %v454, %v590
      %592 = vmatmul.bf16.gmra.mxu0 %v520
      %v593 = vpop.f32.mrf.mxu0
      %v594 = vadd.f32 %v459, %v593
      %v595 = vpop.f32.mrf.mxu0
      %v596 = vadd.f32 %v464, %v595
      %597 = vmatmul.bf16.gmra.mxu0 %v523
      %v598 = vpop.f32.mrf.mxu0
      %v599 = vadd.f32 %v469, %v598
      %v600 = vpop.f32.mrf.mxu0
      %v601 = vadd.f32 %v474, %v600
      %602 = vdwg.mxu0
      %v603 = vmax.f32 %v535, 0.0
      %v604 = vmax.f32 %v574, 0.0
      %v605 = vmax.f32 %v537, 0.0
      %v606 = vmax.f32 %v576, 0.0
      %v607 = vmax.f32 %v540, 0.0
      %v608 = vmax.f32 %v579, 0.0
      %v609 = vmax.f32 %v542, 0.0
      %v610 = vmax.f32 %v581, 0.0
      %v611 = vmax.f32 %v545, 0.0
      %v612 = vmax.f32 %v584, 0.0
      %v613 = vmax.f32 %v547, 0.0
      %v614 = vmax.f32 %v586, 0.0
      %v615 = vmax.f32 %v550, 0.0
      %v616 = vmax.f32 %v589, 0.0
      %v617 = vmax.f32 %v552, 0.0
      %v618 = vmax.f32 %v591, 0.0
      %v619 = vmax.f32 %v555, 0.0
      %v620 = vmax.f32 %v594, 0.0
      %v621 = vmax.f32 %v557, 0.0
      %v622 = vmax.f32 %v596, 0.0
      %v623 = vmax.f32 %v560, 0.0
      %v624 = vmax.f32 %v599, 0.0
      %v625 = vmax.f32 %v562, 0.0
      %v626 = vmax.f32 %v601, 0.0
      %v627 = vld [vmem:[%s4] sm:$0x3]
      %v628 = vpack.c.bf16 %v605, %v603
      %v629 = vpack.c.bf16 %v606, %v604
      %v630 = vpack.c.bf16 %v609, %v607
      %v631 = vpack.c.bf16 %v610, %v608
      %v632 = vpack.c.bf16 %v613, %v611
      %v633 = vpack.c.bf16 %v614, %v612
      %v634 = vpack.c.bf16 %v617, %v615
      %v635 = vpack.c.bf16 %v618, %v616
      %v636 = vpack.c.bf16 %v621, %v619
      %v637 = vpack.c.bf16 %v622, %v620
      %v638 = vpack.c.bf16 %v625, %v623
      %v639 = vpack.c.bf16 %v626, %v624
      %v640 = vld [vmem:[%s5] sm:$0x7]
      %642 = vset.pattern.permute.xlu0 0
      %643 = vperm.xlu0 %642, %v640
      %v644 = vpop.permute.xlu0 %643
      %vm646 = vcmask 785408
      %v648 = vsel %vm646, %v627, 0
      %650 = vmatpush.bf16.msra.mxu0 0
      %651 = vmatpush.bf16.msra.mxu0 0
      %652 = vmatpush.bf16.msra.mxu0 %v638
      %653 = vmatpush.bf16.msra.mxu0 %v636
      %654 = vmatpush.bf16.msra.mxu0 %v634
      %655 = vmatpush.bf16.msra.mxu0 %v632
      %656 = vmatpush.bf16.msra.mxu0 %v630
      %657 = vmatpush.bf16.msra.mxu0 %v628
      %658 = vmatmul.bf16.gmra.mxu0 %v648
      %v659 = vpop.f32.mrf.mxu0
      %v660 = vadd.f32 %v644, %v659
      %v661 = vpop.f32.mrf.mxu0
      %662 = vdwg.mxu0
      %663 = vmatpush.bf16.msra.mxu0 0
      %664 = vmatpush.bf16.msra.mxu0 0
      %665 = vmatpush.bf16.msra.mxu0 %v639
      %666 = vmatpush.bf16.msra.mxu0 %v637
      %667 = vmatpush.bf16.msra.mxu0 %v635
      %668 = vmatpush.bf16.msra.mxu0 %v633
      %669 = vmatpush.bf16.msra.mxu0 %v631
      %670 = vmatpush.bf16.msra.mxu0 %v629
      %671 = vmatmul.bf16.gmra.mxu0 %v648
      %v672 = vpop.f32.mrf.mxu0
      %v673 = vadd.f32 %v644, %v672
      %v674 = vpop.f32.mrf.mxu0
      %675 = vdwg.mxu0
      %v678 = vrot.slane %v673, 4
      %vm679 = vcmask 1043456
      %v680 = vsel %vm679, %v660, %v678
      %682 = vst [vmem:[%s271] sm:$0x77] %v680
      %p683 = scmp.lt.s32.totalorder %s17, 1
      %s684 = scalar_select %p683, %s17, 1
      %s685 = smul.addr %s684, 2
      %s686 = smul.addr %s685, 4
      %s687 = scalar_lea.vmem %s6, %s686
      // Predicated region
      $region45: #{qfnet_forward.3} parent=43 // pred_check
        %p688 = pneg %p171
      $region46: #{qfnet_forward.3} parent=43 // pred_check_branch
        %690 = sbr.rel (%p688) target = $region48
      $region47: #{qfnet_forward.3} parent=43 // pred_region
        _
      $region48: #{qfnet_forward.3} parent=43 // pred_fallthru
        _
    $region44: #{qfnet_forward.3} parent=5 // pred_fallthru
      _
    %p691 = scmp.le.s32.totalorder 2, %s12
    // Predicated region
    $region49: #{qfnet_forward.3} parent=5 // pred_check
      %p692 = pneg %p691
    $region50: #{qfnet_forward.3} parent=5 // pred_check_branch
      %694 = sbr.rel (%p692) target = $region52
    $region51: #{qfnet_forward.3} parent=5 // pred_region
      %s695 = ssub.s32 %s12, 2
      // Predicated region
      $region53: #{qfnet_forward.3} parent=51 // pred_check
        %p696 = pneg %p177
      $region54: #{qfnet_forward.3} parent=51 // pred_check_branch
        %698 = sbr.rel (%p696) target = $region56
      $region55: #{qfnet_forward.3} parent=51 // pred_region
        %p699 = scmp.lt.s32.totalorder %s18, 1
        %s700 = scalar_select %p699, %s18, 1
        %s701 = smul.addr %s700, 2
        %s702 = smul.addr %s701, 4
        %s703 = scalar_lea.vmem %s6, %s702
      $region56: #{qfnet_forward.3} parent=51 // pred_fallthru
        _
    $region52: #{qfnet_forward.3} parent=5 // pred_fallthru
      _
  $region6: #{qfnet_forward.3} parent=0 // loop_footer
    %s16 = sadd.s32 1, %s12
  $region7: #{qfnet_forward.3} parent=0 // loop_footer_branch
    %11 = sbr.rel target = $region3
  $region8: #{qfnet_forward.3} parent=0 // loop_exit
    _

</llo_original>
